<compile_context>
chip_gen: v7x
topology: tpu7x:2x2x1
jax: 0.10.0
libtpu: 0.0.40
codegen_flags: <defaults>
</compile_context>

<pallas_src>
import functools

import numpy as np
import jax
import jax.numpy as jnp
from jax.experimental import pallas as pl
from jax.experimental.pallas import tpu as pltpu

LANES = 128


# ----------------------------- Pallas kernel --------------------------------
def _difformer_attn_kernel(qkv_ref, nl_ref, bd_ref, bdd_ref, avg_ref, o_ref,
                           *, m_pad, groups):
    # qkv_ref: VMEM f32 [G, 3*M, 128]  rows [0,M)=q, [M,2M)=k, [2M,3M)=v;
    #                                  lanes pack GL graphs x H heads x D channels
    # nl_ref : VMEM f32 [G, 1, 128]    per-lane graph size (1.0 on unused lanes)
    # bd_ref : VMEM f32 [128, 128]     per-(graph-slot, head) block-diagonal ones
    # bdd_ref: VMEM f32 [128, 256]     [bd | bd] mask for the fused 256-wide RHS
    # avg_ref: VMEM f32 [128, 128]     head-mean projector into compact out lanes
    # o_ref  : VMEM f32 [G, M, 128]
    M = m_pad
    for g in range(groups):  # static unroll over lane-groups in this block
        qk = qkv_ref[g, 0:2 * M, :]            # (2M, 128)  q rows then k rows
        v = qkv_ref[g, 2 * M:3 * M, :]         # (M, 128)

        # Per-(slot, head) row L2 norms for q and k with ONE block-diag MXU
        # matmul (q/k stacked on the sublane axis); rsqrt runs on the EUP.
        nsq = jnp.dot(qk * qk, bd_ref[...], preferred_element_type=jnp.float32)
        qk_hat = qk * jax.lax.rsqrt(jnp.maximum(nsq, 1e-12))
        qh = qk_hat[0:M, :]
        kh = qk_hat[M:2 * M, :]

        # One node-axis contraction produces both k^T v (lanes 0:128) and the
        # per-lane k_sum replication (lanes 128:256); bdd zeroes cross-head /
        # cross-graph blocks.  No transposes are materialized.
        vext = jnp.concatenate([v, jnp.ones((M, LANES), jnp.float32)], axis=1)
        rhs = jax.lax.dot_general(kh, vext, (((0,), (0,)), ((), ())),
                                  preferred_element_type=jnp.float32) * bdd_ref[...]
        v_sum = jnp.sum(v, axis=0, keepdims=True)                     # (1, 128) XLU

        # Fused numerator/denominator matmul: N=256 fills the 256-wide MXU.
        nd = jnp.dot(qh, rhs, preferred_element_type=jnp.float32)     # (M, 256)
        numerator = nd[:, 0:LANES] + v_sum
        denominator = nd[:, LANES:2 * LANES] + nl_ref[g]
        denominator = jnp.where(denominator == 0.0, 1.0, denominator)  # degenerate guard
        per_head = numerator * pl.reciprocal(denominator, approx=True)

        # Mean over heads into compact per-graph-slot lanes; lane-dense store.
        o_ref[g, :, :] = jnp.dot(per_head, avg_ref[...],
                                 preferred_element_type=jnp.float32).astype(o_ref.dtype)


def difformer_attention_pallas(qkv, nl, bd, bdd, avg, m_pad, groups):
    """qkv: [NGp, 3*M_pad, 128] f32; nl: [NGp, 1, 128]. Returns [NGp, M_pad, 128]."""
    ngp = qkv.shape[0]
    steps = ngp // groups
    qkv_spec = pl.BlockSpec((groups, 3 * m_pad, LANES), lambda i: (i, 0, 0))
    nl_spec = pl.BlockSpec((groups, 1, LANES), lambda i: (i, 0, 0))
    bd_spec = pl.BlockSpec((LANES, LANES), lambda i: (0, 0))        # resident
    bdd_spec = pl.BlockSpec((LANES, 2 * LANES), lambda i: (0, 0))   # resident
    avg_spec = pl.BlockSpec((LANES, LANES), lambda i: (0, 0))       # resident
    out_spec = pl.BlockSpec((groups, m_pad, LANES), lambda i: (i, 0, 0))
    return pl.pallas_call(
        functools.partial(_difformer_attn_kernel, m_pad=m_pad, groups=groups),
        out_shape=jax.ShapeDtypeStruct((ngp, m_pad, LANES), jnp.float32),
        grid_spec=pltpu.PrefetchScalarGridSpec(
            num_scalar_prefetch=0,
            grid=(steps,),
            in_specs=[qkv_spec, nl_spec, bd_spec, bdd_spec, avg_spec],
            out_specs=out_spec,
        ),
        compiler_params=pltpu.CompilerParams(
            dimension_semantics=("parallel",)),
    )(qkv, nl, bd, bdd, avg)


# -------------------------- static lane-structure ----------------------------
def _lane_constants(num_heads, head_dim, slots, lanes=LANES):
    """bd (per-slot/per-head block diag), bdd = [bd|bd], avg (head-mean projector)."""
    hd = num_heads * head_dim
    used = slots * hd
    assert used <= lanes
    i = np.arange(lanes)[:, None]
    j = np.arange(lanes)[None, :]
    inside = (i < used) & (j < used)
    bd = (inside & ((i // head_dim) == (j // head_dim))).astype(np.float32)
    bdd = np.concatenate([bd, bd], axis=1)
    slot_i = i // hd
    chan_i = (i % hd) % head_dim
    avg = ((i < used) & (j < slots * head_dim) & ((j // head_dim) == slot_i)
           & ((j % head_dim) == chan_i)).astype(np.float32) / float(num_heads)
    return jnp.asarray(bd), jnp.asarray(bdd), jnp.asarray(avg)


def _choose_groups_per_step(num_groups, m_pad):
    # Enough rows per grid step to amortize ~0.35us/step overhead, modest VMEM
    # blocks, and >= 2 grid steps whenever possible so v7x shards across both TCs.
    g = max(1, min(8, num_groups, 2048 // max(m_pad, 8)))
    if num_groups >= 2:
        g = min(g, -(-num_groups // 2))
    return g


# ----------------------------- Module wrapper --------------------------------
class DIFFormerConvPallas:
    """Forward-only mirror of the PyTorch DIFFormerConv module."""

    def __init__(self, in_channels, out_channels, num_heads=1, use_weight=True,
                 key=jax.random.PRNGKey(0)):
        self.in_channels = in_channels
        self.out_channels = out_channels
        self.num_heads = num_heads
        self.use_weight = use_weight
        hd = out_channels * num_heads
        assert hd <= LANES, "num_heads * out_channels must fit in 128 lanes"
        if not use_weight:
            assert num_heads == 1 and in_channels == out_channels, (
                "use_weight=False requires num_heads == 1 and "
                "in_channels == out_channels (matches the torch reshape).")
        # lane-pack several graphs per 128-lane group when H*D <= 64
        self.graphs_per_lane_group = max(1, LANES // hd)

        bound = 1.0 / float(np.sqrt(in_channels))
        keys = jax.random.split(key, 3)

        def make_linear(k):
            kw, kb = jax.random.split(k)
            W = jax.random.uniform(kw, (hd, in_channels), jnp.float32, -bound, bound)
            b = jax.random.uniform(kb, (hd,), jnp.float32, -bound, bound)
            return W, b

        self.Wq = make_linear(keys[0])
        self.Wk = make_linear(keys[1])
        if use_weight:
            self.Wv = make_linear(keys[2])

        self._bd, self._bdd, self._avg = _lane_constants(
            num_heads, out_channels, self.graphs_per_lane_group)

    def __call__(self, x, n_nodes):
        """x: [N, in_channels] jnp array.  n_nodes: host numpy int array [B].
        n_nodes stays on host so every padding size / gather index is static
        (no device->host syncs inside the forward)."""
        n_nodes = np.asarray(n_nodes, dtype=np.int32)
        B = int(n_nodes.shape[0])
        N = int(n_nodes.sum())
        H, D = self.num_heads, self.out_channels
        HD = H * D
        GL = self.graphs_per_lane_group
        M = max(int(n_nodes.max()), 1)
        M_pad = -(-M // 8) * 8                      # sublane multiple

        def linear(params):
            W, b = params
            return (x @ W.T + b).astype(jnp.float32)   # [N, H*D] packed-head lanes

        q = linear(self.Wq)
        k = linear(self.Wk)
        v = linear(self.Wv) if self.use_weight else x.astype(jnp.float32)

        # --- host-side static packing bookkeeping ---------------------------
        offsets = np.concatenate([[0], np.cumsum(n_nodes)[:-1]]).astype(np.int64)
        NG = -(-B // GL)                             # lane-groups
        G = _choose_groups_per_step(NG, M_pad)       # lane-groups per grid step
        NGp = -(-NG // G) * G                        # padded to a whole grid

        g_ids = np.arange(NGp * GL).reshape(NGp, GL)            # graph per (group, slot)
        in_range = g_ids < B
        g_safe = np.minimum(g_ids, max(B - 1, 0))
        n_per = np.where(in_range, n_nodes[g_safe], 0)
        off_per = np.where(in_range, offsets[g_safe], 0)
        pos = np.arange(M_pad)
        valid = pos[None, None, :] < n_per[:, :, None]
        gather_idx = np.where(valid, off_per[:, :, None] + pos[None, None, :],
                              N).astype(np.int32)               # N -> zero pad row

        # --- pack q|k|v into one lane-dense stream [NGp, 3*M_pad, 128] -------
        qkv = jnp.stack([q, k, v], axis=0)                      # [3, N, HD]
        qkv = jnp.pad(qkv, ((0, 0), (0, 1), (0, 0)))            # zero row at index N
        gathered = qkv[:, jnp.asarray(gather_idx), :]           # [3, NGp, GL, M_pad, HD]
        gathered = jnp.transpose(gathered, (1, 0, 3, 2, 4))     # [NGp, 3, M_pad, GL, HD]
        packed = gathered.reshape(NGp, 3 * M_pad, GL * HD)
        packed = jnp.pad(packed, ((0, 0), (0, 0), (0, LANES - GL * HD)))

        # per-lane graph sizes (1.0 on unused / empty-slot lanes -> no NaN)
        n_clamped = np.maximum(n_per, 1).astype(np.float32)     # [NGp, GL]
        nl = np.repeat(n_clamped[:, :, None], HD, axis=2).reshape(NGp, GL * HD)
        nl = np.pad(nl, ((0, 0), (0, LANES - GL * HD)), constant_values=1.0)
        nl = nl.reshape(NGp, 1, LANES)

        out_pad = difformer_attention_pallas(
            packed, jnp.asarray(nl), self._bd, self._bdd, self._avg, M_pad, G)

        # --- unpad back to [N, D] (static gather indices) -------------------
        batch_of_node = np.repeat(np.arange(B), n_nodes)
        local_pos = np.arange(N) - offsets[batch_of_node]
        group = batch_of_node // GL
        slot = batch_of_node % GL
        flat_row = (group * M_pad + local_pos).astype(np.int32)
        col = (slot[:, None] * D + np.arange(D)[None, :]).astype(np.int32)
        rows = out_pad.reshape(NGp * M_pad, LANES)[jnp.asarray(flat_row)]
        return jnp.take_along_axis(rows, jnp.asarray(col), axis=1)


# ----------------------------- pure-JAX reference ----------------------------
def _reference_head(q, k, v, n_nodes):
    B = n_nodes.shape[0]
    batch = jnp.asarray(np.repeat(np.arange(B, dtype=np.int32), n_nodes))
    qn = q / jnp.linalg.norm(q, axis=1, keepdims=True)
    kn = k / jnp.linalg.norm(k, axis=1, keepdims=True)
    kv = jax.ops.segment_sum(kn[:, :, None] * v[:, None, :], batch, B)   # [B,D,D]
    k_sum = jax.ops.segment_sum(kn, batch, B)                             # [B,D]
    v_sum = jax.ops.segment_sum(v, batch, B)                              # [B,D]
    num = jnp.einsum('nd,nde->ne', qn, kv[batch]) + v_sum[batch]
    den = (jnp.einsum('nd,nd->n', qn, k_sum[batch])
           + jnp.asarray(n_nodes, jnp.float32)[batch])
    return num / den[:, None]


def _reference_forward(module, x, n_nodes):
    n_nodes = np.asarray(n_nodes, dtype=np.int32)
    N = x.shape[0]
    H, D = module.num_heads, module.out_channels
    q = (x @ module.Wq[0].T + module.Wq[1]).reshape(N, H, D)
    k = (x @ module.Wk[0].T + module.Wk[1]).reshape(N, H, D)
    if module.use_weight:
        v = (x @ module.Wv[0].T + module.Wv[1]).reshape(N, H, D)
    else:
        v = x.reshape(N, 1, D)
    outs = [_reference_head(q[:, i], k[:, i], v[:, min(i, v.shape[1] - 1)], n_nodes)
            for i in range(H)]
    return jnp.stack(outs, axis=1).mean(axis=1) if H > 1 else outs[0]


# ----------------------------------- main ------------------------------------
if __name__ == "__main__":
    key = jax.random.PRNGKey(0)
    k_param, k_x = jax.random.split(key)

    in_channels, out_channels, num_heads = 16, 32, 2
    # 8 graphs, 36 nodes total -> 4 lane-groups (2 graphs/group), 2 grid steps.
    n_nodes = np.array([5, 3, 8, 6, 7, 2, 4, 1], dtype=np.int32)
    N = int(n_nodes.sum())

    x = jax.random.normal(k_x, (N, in_channels), dtype=jnp.float32)

    layer = DIFFormerConvPallas(in_channels, out_channels,
                                num_heads=num_heads, use_weight=True, key=k_param)

    out = jax.block_until_ready(layer(x, n_nodes))

    ref = _reference_forward(layer, x, n_nodes)
    assert out.shape == (N, out_channels)
    err = float(jnp.max(jnp.abs(out - ref)))
    # tolerance covers the EUP approx-reciprocal / rsqrt fast paths
    assert jnp.allclose(out, ref, atol=2e-3, rtol=2e-3), f"max abs err {err}"

    print("KERNEL_OK")
</pallas_src>

<mosaic_0001>
module attributes {stable_mosaic.version = 11 : i64} {
  func.func @_difformer_attn_kernel(%arg0: i32, %arg1: memref<2x24x128xf32, #tpu.memory_space<vmem>>, %arg2: memref<2x1x128xf32, #tpu.memory_space<vmem>>, %arg3: memref<128x128xf32, #tpu.memory_space<vmem>>, %arg4: memref<128x256xf32, #tpu.memory_space<vmem>>, %arg5: memref<128x128xf32, #tpu.memory_space<vmem>>, %arg6: memref<2x8x128xf32, #tpu.memory_space<vmem>>) attributes {dimension_semantics = [#tpu.dimension_semantics<parallel>], iteration_bounds = array<i64: 2>, scalar_prefetch = 0 : i64, scratch_operands = 0 : i64, tpu.core_type = #tpu.core_type<tc>, window_params = [{transform_indices = @transform_0, window_bounds = array<i64: 2, 24, 128>}, {transform_indices = @transform_1, window_bounds = array<i64: 2, 1, 128>}, {pipeline_mode = #tpu.pipeline_mode<synchronous>, transform_indices = @transform_2, window_bounds = array<i64: 128, 128>}, {pipeline_mode = #tpu.pipeline_mode<synchronous>, transform_indices = @transform_3, window_bounds = array<i64: 128, 256>}, {pipeline_mode = #tpu.pipeline_mode<synchronous>, transform_indices = @transform_4, window_bounds = array<i64: 128, 128>}, {transform_indices = @transform_5, window_bounds = array<i64: 2, 8, 128>}]} {
    %c0 = arith.constant 0 : index
    %c0_0 = arith.constant 0 : index
    %c0_1 = arith.constant 0 : index
    %0 = vector.load %arg1[%c0, %c0_0, %c0_1] : memref<2x24x128xf32, #tpu.memory_space<vmem>>, vector<1x16x128xf32>
    %1 = vector.shape_cast %0 : vector<1x16x128xf32> to vector<16x128xf32>
    %c0_2 = arith.constant 0 : index
    %c16 = arith.constant 16 : index
    %c0_3 = arith.constant 0 : index
    %2 = vector.load %arg1[%c0_2, %c16, %c0_3] : memref<2x24x128xf32, #tpu.memory_space<vmem>>, vector<1x8x128xf32>
    %3 = vector.shape_cast %2 : vector<1x8x128xf32> to vector<8x128xf32>
    %4 = arith.mulf %1, %1 : vector<16x128xf32>
    %c0_4 = arith.constant 0 : index
    %c0_5 = arith.constant 0 : index
    %5 = vector.load %arg3[%c0_4, %c0_5] : memref<128x128xf32, #tpu.memory_space<vmem>>, vector<128x128xf32>
    %cst = arith.constant dense<0.000000e+00> : vector<16x128xf32>
    %6 = tpu.matmul %4, %5, %cst {dimension_numbers = #tpu.dot_dimension_numbers<[1], [0], [0], [1], [0, 0, 1, 1], [], []>} : vector<16x128xf32>, vector<128x128xf32>, vector<16x128xf32> -> vector<16x128xf32>
    %cst_6 = arith.constant 9.99999996E-13 : f32
    %7 = vector.broadcast %cst_6 : f32 to vector<16x128xf32>
    %8 = arith.maximumf %6, %7 : vector<16x128xf32>
    %9 = math.rsqrt %8 : vector<16x128xf32>
    %10 = arith.mulf %1, %9 : vector<16x128xf32>
    %11 = vector.extract_strided_slice %10 {offsets = [0, 0], sizes = [8, 128], strides = [1, 1]} : vector<16x128xf32> to vector<8x128xf32>
    %12 = vector.extract_strided_slice %10 {offsets = [8, 0], sizes = [8, 128], strides = [1, 1]} : vector<16x128xf32> to vector<8x128xf32>
    %cst_7 = arith.constant 1.000000e+00 : f32
    %13 = vector.broadcast %cst_7 : f32 to vector<8x128xf32>
    %14 = tpu.concatenate %3, %13 in 1 : vector<8x128xf32>, vector<8x128xf32> -> vector<8x256xf32>
    %cst_8 = arith.constant dense<0.000000e+00> : vector<128x256xf32>
    %15 = tpu.matmul %12, %14, %cst_8 {dimension_numbers = #tpu.dot_dimension_numbers<[0], [0], [1], [1], [0, 1, 1, 1], [], []>} : vector<8x128xf32>, vector<8x256xf32>, vector<128x256xf32> -> vector<128x256xf32>
    %c0_9 = arith.constant 0 : index
    %c0_10 = arith.constant 0 : index
    %16 = vector.load %arg4[%c0_9, %c0_10] : memref<128x256xf32, #tpu.memory_space<vmem>>, vector<128x256xf32>
    %17 = arith.mulf %15, %16 : vector<128x256xf32>
    %cst_11 = arith.constant dense<0.000000e+00> : vector<128xf32>
    %18 = vector.multi_reduction <add>, %3, %cst_11 [0] : vector<8x128xf32> to vector<128xf32>
    %19 = vector.shape_cast %18 : vector<128xf32> to vector<1x128xf32>
    %cst_12 = arith.constant dense<0.000000e+00> : vector<8x256xf32>
    %20 = tpu.matmul %11, %17, %cst_12 {dimension_numbers = #tpu.dot_dimension_numbers<[1], [0], [0], [1], [0, 0, 1, 1], [], []>} : vector<8x128xf32>, vector<128x256xf32>, vector<8x256xf32> -> vector<8x256xf32>
    %21 = vector.extract_strided_slice %20 {offsets = [0, 0], sizes = [8, 128], strides = [1, 1]} : vector<8x256xf32> to vector<8x128xf32>
    %22 = vector.broadcast %19 : vector<1x128xf32> to vector<8x128xf32>
    %23 = arith.addf %21, %22 : vector<8x128xf32>
    %24 = vector.extract_strided_slice %20 {offsets = [0, 128], sizes = [8, 128], strides = [1, 1]} : vector<8x256xf32> to vector<8x128xf32>
    %c0_13 = arith.constant 0 : index
    %c0_14 = arith.constant 0 : index
    %c0_15 = arith.constant 0 : index
    %25 = vector.load %arg2[%c0_13, %c0_14, %c0_15] : memref<2x1x128xf32, #tpu.memory_space<vmem>>, vector<1x1x128xf32>
    %26 = vector.shape_cast %25 : vector<1x1x128xf32> to vector<1x128xf32>
    %27 = vector.broadcast %26 : vector<1x128xf32> to vector<8x128xf32>
    %28 = arith.addf %24, %27 : vector<8x128xf32>
    %cst_16 = arith.constant 0.000000e+00 : f32
    %29 = vector.broadcast %cst_16 : f32 to vector<8x128xf32>
    %30 = arith.cmpf oeq, %28, %29 : vector<8x128xf32>
    %cst_17 = arith.constant 1.000000e+00 : f32
    %31 = vector.broadcast %cst_17 : f32 to vector<8x128xf32>
    %32 = arith.select %30, %31, %28 : vector<8x128xi1>, vector<8x128xf32>
    %33 = tpu.reciprocal %32 {approx = true} : vector<8x128xf32> -> vector<8x128xf32>
    %34 = arith.mulf %23, %33 : vector<8x128xf32>
    %c0_18 = arith.constant 0 : index
    %c0_19 = arith.constant 0 : index
    %35 = vector.load %arg5[%c0_18, %c0_19] : memref<128x128xf32, #tpu.memory_space<vmem>>, vector<128x128xf32>
    %cst_20 = arith.constant dense<0.000000e+00> : vector<8x128xf32>
    %36 = tpu.matmul %34, %35, %cst_20 {dimension_numbers = #tpu.dot_dimension_numbers<[1], [0], [0], [1], [0, 0, 1, 1], [], []>} : vector<8x128xf32>, vector<128x128xf32>, vector<8x128xf32> -> vector<8x128xf32>
    %c0_21 = arith.constant 0 : index
    %c0_22 = arith.constant 0 : index
    %c0_23 = arith.constant 0 : index
    %37 = vector.load %arg6[%c0_21, %c0_22, %c0_23] : memref<2x8x128xf32, #tpu.memory_space<vmem>>, vector<1x8x128xf32>
    %38 = vector.shape_cast %37 : vector<1x8x128xf32> to vector<8x128xf32>
    %39 = vector.shape_cast %36 : vector<8x128xf32> to vector<1x8x128xf32>
    tpu.vector_store %arg6[%c0_21, %c0_22, %c0_23], %39 {strides = array<i32>} : memref<2x8x128xf32, #tpu.memory_space<vmem>>, vector<1x8x128xf32>,
    %c1 = arith.constant 1 : index
    %c0_24 = arith.constant 0 : index
    %c0_25 = arith.constant 0 : index
    %40 = vector.load %arg1[%c1, %c0_24, %c0_25] : memref<2x24x128xf32, #tpu.memory_space<vmem>>, vector<1x16x128xf32>
    %41 = vector.shape_cast %40 : vector<1x16x128xf32> to vector<16x128xf32>
    %c1_26 = arith.constant 1 : index
    %c16_27 = arith.constant 16 : index
    %c0_28 = arith.constant 0 : index
    %42 = vector.load %arg1[%c1_26, %c16_27, %c0_28] : memref<2x24x128xf32, #tpu.memory_space<vmem>>, vector<1x8x128xf32>
    %43 = vector.shape_cast %42 : vector<1x8x128xf32> to vector<8x128xf32>
    %44 = arith.mulf %41, %41 : vector<16x128xf32>
    %c0_29 = arith.constant 0 : index
    %c0_30 = arith.constant 0 : index
    %45 = vector.load %arg3[%c0_29, %c0_30] : memref<128x128xf32, #tpu.memory_space<vmem>>, vector<128x128xf32>
    %cst_31 = arith.constant dense<0.000000e+00> : vector<16x128xf32>
    %46 = tpu.matmul %44, %45, %cst_31 {dimension_numbers = #tpu.dot_dimension_numbers<[1], [0], [0], [1], [0, 0, 1, 1], [], []>} : vector<16x128xf32>, vector<128x128xf32>, vector<16x128xf32> -> vector<16x128xf32>
    %cst_32 = arith.constant 9.99999996E-13 : f32
    %47 = vector.broadcast %cst_32 : f32 to vector<16x128xf32>
    %48 = arith.maximumf %46, %47 : vector<16x128xf32>
    %49 = math.rsqrt %48 : vector<16x128xf32>
    %50 = arith.mulf %41, %49 : vector<16x128xf32>
    %51 = vector.extract_strided_slice %50 {offsets = [0, 0], sizes = [8, 128], strides = [1, 1]} : vector<16x128xf32> to vector<8x128xf32>
    %52 = vector.extract_strided_slice %50 {offsets = [8, 0], sizes = [8, 128], strides = [1, 1]} : vector<16x128xf32> to vector<8x128xf32>
    %cst_33 = arith.constant 1.000000e+00 : f32
    %53 = vector.broadcast %cst_33 : f32 to vector<8x128xf32>
    %54 = tpu.concatenate %43, %53 in 1 : vector<8x128xf32>, vector<8x128xf32> -> vector<8x256xf32>
    %cst_34 = arith.constant dense<0.000000e+00> : vector<128x256xf32>
    %55 = tpu.matmul %52, %54, %cst_34 {dimension_numbers = #tpu.dot_dimension_numbers<[0], [0], [1], [1], [0, 1, 1, 1], [], []>} : vector<8x128xf32>, vector<8x256xf32>, vector<128x256xf32> -> vector<128x256xf32>
    %c0_35 = arith.constant 0 : index
    %c0_36 = arith.constant 0 : index
    %56 = vector.load %arg4[%c0_35, %c0_36] : memref<128x256xf32, #tpu.memory_space<vmem>>, vector<128x256xf32>
    %57 = arith.mulf %55, %56 : vector<128x256xf32>
    %cst_37 = arith.constant dense<0.000000e+00> : vector<128xf32>
    %58 = vector.multi_reduction <add>, %43, %cst_37 [0] : vector<8x128xf32> to vector<128xf32>
    %59 = vector.shape_cast %58 : vector<128xf32> to vector<1x128xf32>
    %cst_38 = arith.constant dense<0.000000e+00> : vector<8x256xf32>
    %60 = tpu.matmul %51, %57, %cst_38 {dimension_numbers = #tpu.dot_dimension_numbers<[1], [0], [0], [1], [0, 0, 1, 1], [], []>} : vector<8x128xf32>, vector<128x256xf32>, vector<8x256xf32> -> vector<8x256xf32>
    %61 = vector.extract_strided_slice %60 {offsets = [0, 0], sizes = [8, 128], strides = [1, 1]} : vector<8x256xf32> to vector<8x128xf32>
    %62 = vector.broadcast %59 : vector<1x128xf32> to vector<8x128xf32>
    %63 = arith.addf %61, %62 : vector<8x128xf32>
    %64 = vector.extract_strided_slice %60 {offsets = [0, 128], sizes = [8, 128], strides = [1, 1]} : vector<8x256xf32> to vector<8x128xf32>
    %c1_39 = arith.constant 1 : index
    %c0_40 = arith.constant 0 : index
    %c0_41 = arith.constant 0 : index
    %65 = vector.load %arg2[%c1_39, %c0_40, %c0_41] : memref<2x1x128xf32, #tpu.memory_space<vmem>>, vector<1x1x128xf32>
    %66 = vector.shape_cast %65 : vector<1x1x128xf32> to vector<1x128xf32>
    %67 = vector.broadcast %66 : vector<1x128xf32> to vector<8x128xf32>
    %68 = arith.addf %64, %67 : vector<8x128xf32>
    %cst_42 = arith.constant 0.000000e+00 : f32
    %69 = vector.broadcast %cst_42 : f32 to vector<8x128xf32>
    %70 = arith.cmpf oeq, %68, %69 : vector<8x128xf32>
    %cst_43 = arith.constant 1.000000e+00 : f32
    %71 = vector.broadcast %cst_43 : f32 to vector<8x128xf32>
    %72 = arith.select %70, %71, %68 : vector<8x128xi1>, vector<8x128xf32>
    %73 = tpu.reciprocal %72 {approx = true} : vector<8x128xf32> -> vector<8x128xf32>
    %74 = arith.mulf %63, %73 : vector<8x128xf32>
    %c0_44 = arith.constant 0 : index
    %c0_45 = arith.constant 0 : index
    %75 = vector.load %arg5[%c0_44, %c0_45] : memref<128x128xf32, #tpu.memory_space<vmem>>, vector<128x128xf32>
    %cst_46 = arith.constant dense<0.000000e+00> : vector<8x128xf32>
    %76 = tpu.matmul %74, %75, %cst_46 {dimension_numbers = #tpu.dot_dimension_numbers<[1], [0], [0], [1], [0, 0, 1, 1], [], []>} : vector<8x128xf32>, vector<128x128xf32>, vector<8x128xf32> -> vector<8x128xf32>
    %c1_47 = arith.constant 1 : index
    %c0_48 = arith.constant 0 : index
    %c0_49 = arith.constant 0 : index
    %77 = vector.load %arg6[%c1_47, %c0_48, %c0_49] : memref<2x8x128xf32, #tpu.memory_space<vmem>>, vector<1x8x128xf32>
    %78 = vector.shape_cast %77 : vector<1x8x128xf32> to vector<8x128xf32>
    %79 = vector.shape_cast %76 : vector<8x128xf32> to vector<1x8x128xf32>
    tpu.vector_store %arg6[%c1_47, %c0_48, %c0_49], %79 {strides = array<i32>} : memref<2x8x128xf32, #tpu.memory_space<vmem>>, vector<1x8x128xf32>,
    return
  }
  func.func @transform_0(%arg0: i32) -> (i32, i32, i32) {
    %c0_i32 = arith.constant 0 : i32
    %c0_i32_0 = arith.constant 0 : i32
    %c0_i32_1 = arith.constant 0 : i32
    return %arg0, %c0_i32, %c0_i32_0 : i32, i32, i32
  }
  func.func @transform_1(%arg0: i32) -> (i32, i32, i32) {
    %c0_i32 = arith.constant 0 : i32
    %c0_i32_0 = arith.constant 0 : i32
    %c0_i32_1 = arith.constant 0 : i32
    return %arg0, %c0_i32, %c0_i32_0 : i32, i32, i32
  }
  func.func @transform_2(%arg0: i32) -> (i32, i32) {
    %c0_i32 = arith.constant 0 : i32
    %c0_i32_0 = arith.constant 0 : i32
    %c0_i32_1 = arith.constant 0 : i32
    return %c0_i32, %c0_i32_0 : i32, i32
  }
  func.func @transform_3(%arg0: i32) -> (i32, i32) {
    %c0_i32 = arith.constant 0 : i32
    %c0_i32_0 = arith.constant 0 : i32
    %c0_i32_1 = arith.constant 0 : i32
    return %c0_i32, %c0_i32_0 : i32, i32
  }
  func.func @transform_4(%arg0: i32) -> (i32, i32) {
    %c0_i32 = arith.constant 0 : i32
    %c0_i32_0 = arith.constant 0 : i32
    %c0_i32_1 = arith.constant 0 : i32
    return %c0_i32, %c0_i32_0 : i32, i32
  }
  func.func @transform_5(%arg0: i32) -> (i32, i32, i32) {
    %c0_i32 = arith.constant 0 : i32
    %c0_i32_0 = arith.constant 0 : i32
    %c0_i32_1 = arith.constant 0 : i32
    return %arg0, %c0_i32, %c0_i32_0 : i32, i32, i32
  }
}

</mosaic_0001>

<llo_original>
// kernel: tpu_custom_call.1
$region0: #{tpu_custom_call.1}
  #allocation0 [shape = 'u32[]', space=smem, size = 0x4, offset = 0x4, fixed_abs, tag = 'smem constant byte address 0x4 - core index']
  #allocation1 [shape = 'u32[144,128]{1,0:T(1,128)}', space=vmem, size = 0x12000, scoped, tag = 'internal scratch']
  %s0 = inlined_call_operand.hbm [shape: f32[4,24,128], index: 0, kind: input, shape index: {}]
  %s1 = inlined_call_operand.hbm [shape: f32[4,1,128], index: 1, kind: input, shape index: {}]
  %s2 = inlined_call_operand.hbm [shape: f32[128,128], index: 2, kind: input, shape index: {}]
  %s3 = inlined_call_operand.hbm [shape: f32[128,256], index: 3, kind: input, shape index: {}]
  %s4 = inlined_call_operand.hbm [shape: f32[128,128], index: 4, kind: input, shape index: {}]
  %s5 = inlined_call_operand.hbm [shape: f32[4,8,128], index: 5, kind: output, shape index: {}]
  %s6 = sld [smem:[#allocation0]]
  $region73: #{tpu_custom_call.1} parent=0
    _
  %s8 = ssub.s32 1, %s6
  %s9 = scalar_select 0, %s8, %s6
  $region1: #{tpu_custom_call.1} parent=0
    #allocation2 [shape = 'u8[49152]{0}', space=vmem, size = 0xc000, scoped, tag = 'input window, operand 0']
    #allocation3 [shape = 's32[2]{0}', space=sflag, size = 0x8, scoped, tag = 'scoped memory for tpu_custom_call.1']
    #allocation4 [shape = 's32[2]{0}', space=sflag, size = 0x8, scoped, tag = 'scoped memory for tpu_custom_call.1']
    #allocation5 [shape = 'u8[2048]{0}', space=vmem, size = 0x800, scoped, tag = 'input window, operand 1']
    #allocation6 [shape = 's32[2]{0}', space=sflag, size = 0x8, scoped, tag = 'scoped memory for tpu_custom_call.1']
    #allocation7 [shape = 'u8[65536]{0}', space=vmem, size = 0x10000, scoped, tag = 'input window, operand 2, single buffered']
    #allocation8 [shape = 'u8[131072]{0}', space=vmem, size = 0x20000, scoped, tag = 'input window, operand 3, single buffered']
    #allocation9 [shape = 's32[1]{0}', space=sflag, size = 0x4, scoped, tag = 'scoped memory for tpu_custom_call.1']
    #allocation10 [shape = 'u8[65536]{0}', space=vmem, size = 0x10000, scoped, tag = 'input window, operand 4, single buffered']
    #allocation11 [shape = 'u8[16384]{0}', space=vmem, size = 0x4000, scoped, tag = 'output window, operand 0']
    %10 = vsyncpa [#allocation3], 0
    %s11 = scalar_lea.sflag [#allocation3], 1
    %12 = vsyncpa %s11, 0
    %13 = vsyncpa [#allocation6], 0
    %s14 = scalar_lea.sflag [#allocation6], 1
    %15 = vsyncpa %s14, 0
    %16 = vsyncpa [#allocation9], 0
    %17 = vsyncpa [#allocation4], 0
    %s18 = scalar_lea.sflag [#allocation4], 1
    %19 = vsyncpa %s18, 0
    loop: start=0, step=1, limit=4
    $region2: #{tpu_custom_call.1} parent=1 // loop_pre_header
      _
    $region3: #{tpu_custom_call.1} parent=1 // loop_header
      %s21 = sphi 0, %s25
      %p22 = scmp.ge.s32.totalorder %s21, 4
      %s31 = sphi 0, %s33
      %s34 = sphi 0, %s31
      %s35 = sphi 0, %s34
      %s51 = sphi 0, %s35
      %s57 = sphi 0, %s59
      %s60 = sphi 0, %s57
      %s61 = sphi 0, %s60
      %s77 = sphi 0, %s61
      %s81 = sphi 0, %s81
      %s83 = sphi 0, %s81
      %s84 = sphi 0, %s83
      %s98 = sphi 0, %s84
      %s102 = sphi 0, %s102
      %s104 = sphi 0, %s102
      %s105 = sphi 0, %s104
      %s119 = sphi 0, %s105
      %s123 = sphi 0, %s123
      %s125 = sphi 0, %s123
      %s126 = sphi 0, %s125
      %s140 = sphi 0, %s126
      %s146 = sphi 0, %s148
      %s149 = sphi 0, %s146
      %s150 = sphi 0, %s149
      %s166 = sphi 0, %s150
    $region4: #{tpu_custom_call.1} parent=1 // loop_header_branch
      %24 = sbr.rel (%p22) target = $region8
    $region5: #{tpu_custom_call.1} parent=1 // loop_body
      %s26 = ssub.s32 %s21, 1
      %s27 = ssub.s32 %s21, 2
      %s28 = sadd.s32 %s21, 1
      %s29 = ssub.s32 %s21, %s28
      %p30 = scmp.eq.s32.totalorder %s29, 0
      %s32 = sadd.s32 %s31, 1
      %s33 = scalar_select %p30, %s31, %s32
      %p36 = pneg %p30
      %p37 = scmp.eq.s32.totalorder %s21, 1
      %p38 = por %p36, %p37
      %p39 = scmp.ne.s32.totalorder %s31, %s34
      %p40 = scmp.eq.s32.totalorder %s21, 0
      %p41 = por %p39, %p40
      %p42 = scmp.ne.s32.totalorder %s31, %s34
      %p43 = scmp.eq.s32.totalorder %s26, 1
      %p44 = por %p42, %p43
      %p45 = scmp.ne.s32.totalorder %s34, %s35
      %p46 = scmp.eq.s32.totalorder %s26, 0
      %p47 = por %p45, %p46
      %p48 = scmp.ne.s32.totalorder %s34, %s35
      %p49 = scmp.eq.s32.totalorder %s27, 1
      %p50 = por %p48, %p49
      %p52 = scmp.ne.s32.totalorder %s35, %s51
      %p53 = scmp.eq.s32.totalorder %s27, 0
      %p54 = por %p52, %p53
      %s55 = ssub.s32 %s21, %s28
      %p56 = scmp.eq.s32.totalorder %s55, 0
      %s58 = sadd.s32 %s57, 1
      %s59 = scalar_select %p56, %s57, %s58
      %p62 = pneg %p56
      %p63 = scmp.eq.s32.totalorder %s21, 1
      %p64 = por %p62, %p63
      %p65 = scmp.ne.s32.totalorder %s57, %s60
      %p66 = scmp.eq.s32.totalorder %s21, 0
      %p67 = por %p65, %p66
      %p68 = scmp.ne.s32.totalorder %s57, %s60
      %p69 = scmp.eq.s32.totalorder %s26, 1
      %p70 = por %p68, %p69
      %p71 = scmp.ne.s32.totalorder %s60, %s61
      %p72 = scmp.eq.s32.totalorder %s26, 0
      %p73 = por %p71, %p72
      %p74 = scmp.ne.s32.totalorder %s60, %s61
      %p75 = scmp.eq.s32.totalorder %s27, 1
      %p76 = por %p74, %p75
      %p78 = scmp.ne.s32.totalorder %s61, %s77
      %p79 = scmp.eq.s32.totalorder %s27, 0
      %p80 = por %p78, %p79
      %s82 = sadd.s32 %s81, 1
      %p85 = scmp.eq.s32.totalorder %s21, 1
      %p86 = scmp.ne.s32.totalorder %s81, %s83
      %p87 = scmp.eq.s32.totalorder %s21, 0
      %p88 = por %p86, %p87
      %p89 = scmp.ne.s32.totalorder %s81, %s83
      %p90 = scmp.eq.s32.totalorder %s26, 1
      %p91 = por %p89, %p90
      %p92 = scmp.ne.s32.totalorder %s83, %s84
      %p93 = scmp.eq.s32.totalorder %s26, 0
      %p94 = por %p92, %p93
      %p95 = scmp.ne.s32.totalorder %s83, %s84
      %p96 = scmp.eq.s32.totalorder %s27, 1
      %p97 = por %p95, %p96
      %p99 = scmp.ne.s32.totalorder %s84, %s98
      %p100 = scmp.eq.s32.totalorder %s27, 0
      %p101 = por %p99, %p100
      %s103 = sadd.s32 %s102, 1
      %p106 = scmp.eq.s32.totalorder %s21, 1
      %p107 = scmp.ne.s32.totalorder %s102, %s104
      %p108 = scmp.eq.s32.totalorder %s21, 0
      %p109 = por %p107, %p108
      %p110 = scmp.ne.s32.totalorder %s102, %s104
      %p111 = scmp.eq.s32.totalorder %s26, 1
      %p112 = por %p110, %p111
      %p113 = scmp.ne.s32.totalorder %s104, %s105
      %p114 = scmp.eq.s32.totalorder %s26, 0
      %p115 = por %p113, %p114
      %p116 = scmp.ne.s32.totalorder %s104, %s105
      %p117 = scmp.eq.s32.totalorder %s27, 1
      %p118 = por %p116, %p117
      %p120 = scmp.ne.s32.totalorder %s105, %s119
      %p121 = scmp.eq.s32.totalorder %s27, 0
      %p122 = por %p120, %p121
      %s124 = sadd.s32 %s123, 1
      %p127 = scmp.eq.s32.totalorder %s21, 1
      %p128 = scmp.ne.s32.totalorder %s123, %s125
      %p129 = scmp.eq.s32.totalorder %s21, 0
      %p130 = por %p128, %p129
      %p131 = scmp.ne.s32.totalorder %s123, %s125
      %p132 = scmp.eq.s32.totalorder %s26, 1
      %p133 = por %p131, %p132
      %p134 = scmp.ne.s32.totalorder %s125, %s126
      %p135 = scmp.eq.s32.totalorder %s26, 0
      %p136 = por %p134, %p135
      %p137 = scmp.ne.s32.totalorder %s125, %s126
      %p138 = scmp.eq.s32.totalorder %s27, 1
      %p139 = por %p137, %p138
      %p141 = scmp.ne.s32.totalorder %s126, %s140
      %p142 = scmp.eq.s32.totalorder %s27, 0
      %p143 = por %p141, %p142
      %s144 = ssub.s32 %s21, %s28
      %p145 = scmp.eq.s32.totalorder %s144, 0
      %s147 = sadd.s32 %s146, 1
      %s148 = scalar_select %p145, %s146, %s147
      %p151 = pneg %p145
      %p152 = scmp.eq.s32.totalorder %s21, 1
      %p153 = por %p151, %p152
      %p154 = scmp.ne.s32.totalorder %s146, %s149
      %p155 = scmp.eq.s32.totalorder %s21, 0
      %p156 = por %p154, %p155
      %p157 = scmp.ne.s32.totalorder %s146, %s149
      %p158 = scmp.eq.s32.totalorder %s26, 1
      %p159 = por %p157, %p158
      %p160 = scmp.ne.s32.totalorder %s149, %s150
      %p161 = scmp.eq.s32.totalorder %s26, 0
      %p162 = por %p160, %p161
      %p163 = scmp.ne.s32.totalorder %s149, %s150
      %p164 = scmp.eq.s32.totalorder %s27, 1
      %p165 = por %p163, %p164
      %p167 = scmp.ne.s32.totalorder %s150, %s166
      %p168 = scmp.eq.s32.totalorder %s27, 0
      %p169 = por %p167, %p168
      %p170 = scmp.le.s32.totalorder 1, %s21
      %p171 = scmp.lt.s32.totalorder %s21, 3
      %p172 = pnand %p170, %p171
      %p173 = pneg %p172
      // Predicated region
      $region9: #{tpu_custom_call.1} parent=5 // pred_check
        _
      $region10: #{tpu_custom_call.1} parent=5 // pred_check_branch
        %175 = sbr.rel (%p172) target = $region12
      $region11: #{tpu_custom_call.1} parent=5 // pred_region
        %s176 = ssub.s32 %s21, 1
        // Predicated region
        $region13: #{tpu_custom_call.1} parent=11 // pred_check
          %p177 = pneg %p94
        $region14: #{tpu_custom_call.1} parent=11 // pred_check_branch
          %179 = sbr.rel (%p177) target = $region16
        $region15: #{tpu_custom_call.1} parent=11 // pred_region
          %s181 = ssub.s32 2048, 2048
          %182 = vsyncadd [#allocation6], %s181
          %s183 = sshll.u32 [#allocation7], 4
          %s184 = int_to_ptr.vmem [resolvable:$true] %s183
          %189 = dma.hbm_to_vmem [thread:$0]  %s2, 2048, %s184, [#allocation6], 128, 128, 8
        $region16: #{tpu_custom_call.1} parent=11 // pred_fallthru
          _
        // Predicated region
        $region17: #{tpu_custom_call.1} parent=11 // pred_check
          %p190 = pneg %p115
        $region18: #{tpu_custom_call.1} parent=11 // pred_check_branch
          %192 = sbr.rel (%p190) target = $region20
        $region19: #{tpu_custom_call.1} parent=11 // pred_region
          %s194 = ssub.s32 4096, 4096
          %195 = vsyncadd [#allocation9], %s194
          %s196 = sshll.u32 [#allocation8], 4
          %s197 = int_to_ptr.vmem [resolvable:$true] %s196
          %202 = dma.hbm_to_vmem [thread:$0]  %s3, 4096, %s197, [#allocation9], 256, 256, 16
        $region20: #{tpu_custom_call.1} parent=11 // pred_fallthru
          _
        // Predicated region
        $region21: #{tpu_custom_call.1} parent=11 // pred_check
          %p203 = pneg %p136
        $region22: #{tpu_custom_call.1} parent=11 // pred_check_branch
          %205 = sbr.rel (%p203) target = $region24
        $region23: #{tpu_custom_call.1} parent=11 // pred_region
          %s207 = ssub.s32 2048, 2048
          %208 = vsyncadd [#allocation9], %s207
          %s209 = sshll.u32 [#allocation10], 4
          %s210 = int_to_ptr.vmem [resolvable:$true] %s209
          %215 = dma.hbm_to_vmem [thread:$0]  %s4, 2048, %s210, [#allocation9], 128, 128, 8
        $region24: #{tpu_custom_call.1} parent=11 // pred_fallthru
          _
      $region12: #{tpu_custom_call.1} parent=5 // pred_fallthru
        _
      %p216 = scmp.lt.s32.totalorder %s21, 2
      // Predicated region
      $region25: #{tpu_custom_call.1} parent=5 // pred_check
        %p217 = pneg %p216
      $region26: #{tpu_custom_call.1} parent=5 // pred_check_branch
        %219 = sbr.rel (%p217) target = $region28
      $region27: #{tpu_custom_call.1} parent=5 // pred_region
        // Predicated region
        $region29: #{tpu_custom_call.1} parent=27 // pred_check
          %p220 = pneg %p41
        $region30: #{tpu_custom_call.1} parent=27 // pred_check_branch
          %222 = sbr.rel (%p220) target = $region32
        $region31: #{tpu_custom_call.1} parent=27 // pred_region
          %s223 = sand.u32 %s31, 1
          %s224 = scalar_lea.sflag [#allocation3], %s223
          %s225 = sand.u32 %s31, 1
          %s226 = smul.addr %s225, 48
          %s227 = scalar_lea.vmem [#allocation2], %s226
          %s228 = smul.u32 2, %s21
          %s230 = ssub.s32 768, 768
          %231 = vsyncadd %s224, %s230
          %s232 = smul.addr %s228, 3
          %s233 = smul.addr %s232, 128
          %s234 = scalar_lea.hbm %s0, %s233
          %s235 = sshll.u32 %s227, 4
          %s236 = int_to_ptr.vmem [resolvable:$true] %s235
          %241 = dma.hbm_to_vmem [thread:$0]  %s234, 768, %s236, %s224, 128, 128, 8
        $region32: #{tpu_custom_call.1} parent=27 // pred_fallthru
          _
        // Predicated region
        $region33: #{tpu_custom_call.1} parent=27 // pred_check
          %p242 = pneg %p67
        $region34: #{tpu_custom_call.1} parent=27 // pred_check_branch
          %244 = sbr.rel (%p242) target = $region36
        $region35: #{tpu_custom_call.1} parent=27 // pred_region
          %s245 = sand.u32 %s21, 1
          %s246 = scalar_lea.sflag [#allocation6], %s245
          %s247 = sand.u32 %s57, 1
          %s248 = smul.addr %s247, 2
          %s249 = scalar_lea.vmem [#allocation5], %s248
          %s250 = smul.u32 2, %s21
          %s252 = ssub.s32 32, 32
          %253 = vsyncadd %s246, %s252
          %s254 = smul.addr %s250, 16
          %s255 = scalar_lea.hbm %s1, %s254
          %s256 = sshll.u32 %s249, 4
          %s257 = int_to_ptr.vmem [resolvable:$true] %s256
          %262 = dma.hbm_to_vmem [thread:$0]  %s255, 32, %s257, %s246, 16, 16, 1
        $region36: #{tpu_custom_call.1} parent=27 // pred_fallthru
          _
      $region28: #{tpu_custom_call.1} parent=5 // pred_fallthru
        _
      %p263 = scmp.le.s32.totalorder 1, %s21
      %p264 = scmp.lt.s32.totalorder %s21, 3
      %p265 = pnand %p263, %p264
      %p266 = pneg %p265
      // Predicated region
      $region37: #{tpu_custom_call.1} parent=5 // pred_check
        _
      $region38: #{tpu_custom_call.1} parent=5 // pred_check_branch
        %268 = sbr.rel (%p265) target = $region40
      $region39: #{tpu_custom_call.1} parent=5 // pred_region
        %s269 = ssub.s32 %s21, 1
        %s270 = sand.u32 %s34, 1
        %s271 = scalar_lea.sflag [#allocation3], %s270
        %s272 = sand.u32 %s34, 1
        %s273 = smul.addr %s272, 48
        %s274 = scalar_lea.vmem [#allocation2], %s273
        // Predicated region
        $region41: #{tpu_custom_call.1} parent=39 // pred_check
          %p275 = pneg %p47
        $region42: #{tpu_custom_call.1} parent=39 // pred_check_branch
          %277 = sbr.rel (%p275) target = $region44
        $region43: #{tpu_custom_call.1} parent=39 // pred_region
          %278 = dma.done %s271, 768
        $region44: #{tpu_custom_call.1} parent=39 // pred_fallthru
          _
        %s279 = sand.u32 %s26, 1
        %s280 = scalar_lea.sflag [#allocation6], %s279
        %s281 = sand.u32 %s60, 1
        %s282 = smul.addr %s281, 2
        %s283 = scalar_lea.vmem [#allocation5], %s282
        // Predicated region
        $region45: #{tpu_custom_call.1} parent=39 // pred_check
          %p284 = pneg %p73
        $region46: #{tpu_custom_call.1} parent=39 // pred_check_branch
          %286 = sbr.rel (%p284) target = $region48
        $region47: #{tpu_custom_call.1} parent=39 // pred_region
          %287 = dma.done %s280, 32
        $region48: #{tpu_custom_call.1} parent=39 // pred_fallthru
          _
        // Predicated region
        $region49: #{tpu_custom_call.1} parent=39 // pred_check
          %p288 = pneg %p94
        $region50: #{tpu_custom_call.1} parent=39 // pred_check_branch
          %290 = sbr.rel (%p288) target = $region52
        $region51: #{tpu_custom_call.1} parent=39 // pred_region
          %291 = dma.done [#allocation6], 2048
        $region52: #{tpu_custom_call.1} parent=39 // pred_fallthru
          _
        // Predicated region
        $region53: #{tpu_custom_call.1} parent=39 // pred_check
          %p292 = pneg %p115
        $region54: #{tpu_custom_call.1} parent=39 // pred_check_branch
          %294 = sbr.rel (%p292) target = $region56
        $region55: #{tpu_custom_call.1} parent=39 // pred_region
          %295 = dma.done [#allocation9], 4096
        $region56: #{tpu_custom_call.1} parent=39 // pred_fallthru
          _
        // Predicated region
        $region57: #{tpu_custom_call.1} parent=39 // pred_check
          %p296 = pneg %p136
        $region58: #{tpu_custom_call.1} parent=39 // pred_check_branch
          %298 = sbr.rel (%p296) target = $region60
        $region59: #{tpu_custom_call.1} parent=39 // pred_region
          %299 = dma.done [#allocation9], 2048
        $region60: #{tpu_custom_call.1} parent=39 // pred_fallthru
          _
        %s300 = sand.u32 %s34, 1
        %s301 = scalar_lea.sflag [#allocation3], %s300
        %s302 = sand.u32 %s34, 1
        %s303 = smul.addr %s302, 48
        %s304 = scalar_lea.vmem [#allocation2], %s303
        %p305 = pneg %p47
        %p306 = pneg %p44
        %s307 = sand.u32 %s26, 1
        %s308 = scalar_lea.sflag [#allocation6], %s307
        %s309 = sand.u32 %s60, 1
        %s310 = smul.addr %s309, 2
        %s311 = scalar_lea.vmem [#allocation5], %s310
        %p312 = pneg %p73
        %p313 = pneg %p70
        %p314 = pneg %p94
        %p315 = pneg %p91
        %p316 = pneg %p115
        %p317 = pneg %p112
        %p318 = pneg %p136
        %p319 = pneg %p133
        %p320 = pneg %p162
        %p321 = pneg %p159
        %s322 = sand.u32 %s149, 1
        %s323 = scalar_lea.sflag [#allocation4], %s322
        %s324 = sand.u32 %s149, 1
        %s325 = smul.addr %s324, 16
        %s326 = scalar_lea.vmem [#allocation11], %s325
        %s327 = smul.u32 2, %s26
        %s328 = smul.u32 2, %s26
        %s329 = smul.u32 2, %s26
        %v330 = vld [vmem:[%s274] sm:$0xff]
        %v331 = vld [vmem:[%s274 + $0x8] sm:$0xff]
        %v332 = vld [vmem:[%s274 + $0x10] sm:$0xff]
        %v333 = vmul.f32 %v330, %v330
        %v334 = vmul.f32 %v331, %v331
        %v335 = vld [vmem:[#allocation7] sm:$0xff]
        %v336 = vld [vmem:[#allocation7 + $0x8] sm:$0xff]
        %v337 = vld [vmem:[#allocation7 + $0x10] sm:$0xff]
        %v338 = vld [vmem:[#allocation7 + $0x18] sm:$0xff]
        %v339 = vld [vmem:[#allocation7 + $0x20] sm:$0xff]
        %v340 = vld [vmem:[#allocation7 + $0x28] sm:$0xff]
        %v341 = vld [vmem:[#allocation7 + $0x30] sm:$0xff]
        %v342 = vld [vmem:[#allocation7 + $0x38] sm:$0xff]
        %v343 = vld [vmem:[#allocation7 + $0x40] sm:$0xff]
        %v344 = vld [vmem:[#allocation7 + $0x48] sm:$0xff]
        %v345 = vld [vmem:[#allocation7 + $0x50] sm:$0xff]
        %v346 = vld [vmem:[#allocation7 + $0x58] sm:$0xff]
        %v347 = vld [vmem:[#allocation7 + $0x60] sm:$0xff]
        %v348 = vld [vmem:[#allocation7 + $0x68] sm:$0xff]
        %v349 = vld [vmem:[#allocation7 + $0x70] sm:$0xff]
        %v350 = vld [vmem:[#allocation7 + $0x78] sm:$0xff]
        %351 = vmatprep.subr.mxu0 0.0
        %352 = vmatpush1.msra.mxu0 %v335
        %353 = vmatprep.subr.mxu0 0.0
        %354 = vmatpush1.msra.mxu0 %v336
        %355 = vmatprep.subr.mxu0 0.0
        %356 = vmatpush1.msra.mxu0 %v337
        %357 = vmatprep.subr.mxu0 0.0
        %358 = vmatpush1.msra.mxu0 %v338
        %359 = vmatprep.subr.mxu0 0.0
        %360 = vmatpush1.msra.mxu0 %v339
        %361 = vmatprep.subr.mxu0 0.0
        %362 = vmatpush1.msra.mxu0 %v340
        %363 = vmatprep.subr.mxu0 0.0
        %364 = vmatpush1.msra.mxu0 %v341
        %365 = vmatprep.subr.mxu0 0.0
        %366 = vmatpush1.msra.mxu0 %v342
        %367 = vmatprep.subr.mxu0 0.0
        %368 = vmatpush1.msra.mxu0 %v343
        %369 = vmatprep.subr.mxu0 0.0
        %370 = vmatpush1.msra.mxu0 %v344
        %371 = vmatprep.subr.mxu0 0.0
        %372 = vmatpush1.msra.mxu0 %v345
        %373 = vmatprep.subr.mxu0 0.0
        %374 = vmatpush1.msra.mxu0 %v346
        %375 = vmatprep.subr.mxu0 0.0
        %376 = vmatpush1.msra.mxu0 %v347
        %377 = vmatprep.subr.mxu0 0.0
        %378 = vmatpush1.msra.mxu0 %v348
        %379 = vmatprep.subr.mxu0 0.0
        %380 = vmatpush1.msra.mxu0 %v349
        %381 = vmatprep.subr.mxu0 0.0
        %382 = vmatpush1.msra.mxu0 %v350
        %383 = vmatprep.subr.mxu0 0.0
        %384 = vmatpush1.msra.mxu0 0.0
        %385 = vmatprep.subr.mxu0 0.0
        %386 = vmatpush1.msra.mxu0 0.0
        %387 = vmatprep.subr.mxu0 0.0
        %388 = vmatpush1.msra.mxu0 0.0
        %389 = vmatprep.subr.mxu0 0.0
        %390 = vmatpush1.msra.mxu0 0.0
        %391 = vmatprep.subr.mxu0 0.0
        %392 = vmatpush1.msra.mxu0 0.0
        %393 = vmatprep.subr.mxu0 0.0
        %394 = vmatpush1.msra.mxu0 0.0
        %395 = vmatprep.subr.mxu0 0.0
        %396 = vmatpush1.msra.mxu0 0.0
        %397 = vmatprep.subr.mxu0 0.0
        %398 = vmatpush1.msra.mxu0 0.0
        %399 = vmatprep.subr.mxu0 0.0
        %400 = vmatpush1.msra.mxu0 0.0
        %401 = vmatprep.subr.mxu0 0.0
        %402 = vmatpush1.msra.mxu0 0.0
        %403 = vmatprep.subr.mxu0 0.0
        %404 = vmatpush1.msra.mxu0 0.0
        %405 = vmatprep.subr.mxu0 0.0
        %406 = vmatpush1.msra.mxu0 0.0
        %407 = vmatprep.subr.mxu0 0.0
        %408 = vmatpush1.msra.mxu0 0.0
        %409 = vmatprep.subr.mxu0 0.0
        %410 = vmatpush1.msra.mxu0 0.0
        %411 = vmatprep.subr.mxu0 0.0
        %412 = vmatpush1.msra.mxu0 0.0
        %413 = vmatprep.subr.mxu0 0.0
        %414 = vmatpush1.msra.mxu0 0.0
        %415 = vmatprep.mubr.f32.mxu0 0.0
        %416 = vmatmul.mubr.f32.gmra.mrb[0].mxu0 %v333
        %v417 = vpop.f32.mrb[0].mxu0
        %v418 = vadd.f32 0.0, %v417
        %v419 = vpop.f32.mrb[0].mxu0
        %420 = vmatprep.mubr.f32.mxu0 0.0
        %421 = vmatmul.mubr.f32.gmra.mrb[0].mxu0 %v334
        %v422 = vpop.f32.mrb[0].mxu0
        %v423 = vadd.f32 0.0, %v422
        %v424 = vpop.f32.mrb[0].mxu0
        %425 = vdwg.mxu0
        %v426 = vmax.f32 %v418, 1e-12
        %v427 = vmax.f32 %v423, 1e-12
        %v428 = vrsqrt.pop %v426
        %v429 = vrsqrt.pop %v427
        %v430 = vmul.f32 %v330, %v428
        %v431 = vmul.f32 %v331, %v429
        %432 = vxpose.xlu0.b32.start [1/16] %v431, 128
        %433 = vxpose.xlu0.b32.cont [2/16] 0.0, 128
        %434 = vxpose.xlu0.b32.cont [3/16] 0.0, 128
        %435 = vxpose.xlu0.b32.cont [4/16] 0.0, 128
        %436 = vxpose.xlu0.b32.cont [5/16] 0.0, 128
        %437 = vxpose.xlu0.b32.cont [6/16] 0.0, 128
        %438 = vxpose.xlu0.b32.cont [7/16] 0.0, 128
        %439 = vxpose.xlu0.b32.cont [8/16] 0.0, 128
        %440 = vxpose.xlu0.b32.cont [9/16] 0.0, 128
        %441 = vxpose.xlu0.b32.cont [10/16] 0.0, 128
        %442 = vxpose.xlu0.b32.cont [11/16] 0.0, 128
        %443 = vxpose.xlu0.b32.cont [12/16] 0.0, 128
        %444 = vxpose.xlu0.b32.cont [13/16] 0.0, 128
        %445 = vxpose.xlu0.b32.cont [14/16] 0.0, 128
        %446 = vxpose.xlu0.b32.cont [15/16] 0.0, 128
        %447 = vxpose.xlu0.b32.end [16/16] 0.0, 128
        %v448 = vpop.trf.xlu0
        %v449 = vpop.trf.xlu0
        %v450 = vpop.trf.xlu0
        %v451 = vpop.trf.xlu0
        %v452 = vpop.trf.xlu0
        %v453 = vpop.trf.xlu0
        %v454 = vpop.trf.xlu0
        %v455 = vpop.trf.xlu0
        %v456 = vpop.trf.xlu0
        %v457 = vpop.trf.xlu0
        %v458 = vpop.trf.xlu0
        %v459 = vpop.trf.xlu0
        %v460 = vpop.trf.xlu0
        %v461 = vpop.trf.xlu0
        %v462 = vpop.trf.xlu0
        %v463 = vpop.trf.xlu0
        %vm464 = vcmask 64512
        %v466 = vsel %vm464, %v448, 0
        %v469 = vsel %vm464, %v449, 0
        %v472 = vsel %vm464, %v450, 0
        %v475 = vsel %vm464, %v451, 0
        %v478 = vsel %vm464, %v452, 0
        %v481 = vsel %vm464, %v453, 0
        %v484 = vsel %vm464, %v454, 0
        %v487 = vsel %vm464, %v455, 0
        %v490 = vsel %vm464, %v456, 0
        %v493 = vsel %vm464, %v457, 0
        %v496 = vsel %vm464, %v458, 0
        %v499 = vsel %vm464, %v459, 0
        %v502 = vsel %vm464, %v460, 0
        %v505 = vsel %vm464, %v461, 0
        %v508 = vsel %vm464, %v462, 0
        %v511 = vsel %vm464, %v463, 0
        %513 = vmatprep.subr.mxu0 1.0
        %514 = vmatpush1.msra.mxu0 %v332
        %515 = vmatprep.subr.mxu0 0.0
        %516 = vmatpush1.msra.mxu0 0.0
        %517 = vmatprep.subr.mxu0 0.0
        %518 = vmatpush1.msra.mxu0 0.0
        %519 = vmatprep.subr.mxu0 0.0
        %520 = vmatpush1.msra.mxu0 0.0
        %521 = vmatprep.subr.mxu0 0.0
        %522 = vmatpush1.msra.mxu0 0.0
        %523 = vmatprep.subr.mxu0 0.0
        %524 = vmatpush1.msra.mxu0 0.0
        %525 = vmatprep.subr.mxu0 0.0
        %526 = vmatpush1.msra.mxu0 0.0
        %527 = vmatprep.subr.mxu0 0.0
        %528 = vmatpush1.msra.mxu0 0.0
        %529 = vmatprep.subr.mxu0 0.0
        %530 = vmatpush1.msra.mxu0 0.0
        %531 = vmatprep.subr.mxu0 0.0
        %532 = vmatpush1.msra.mxu0 0.0
        %533 = vmatprep.subr.mxu0 0.0
        %534 = vmatpush1.msra.mxu0 0.0
        %535 = vmatprep.subr.mxu0 0.0
        %536 = vmatpush1.msra.mxu0 0.0
        %537 = vmatprep.subr.mxu0 0.0
        %538 = vmatpush1.msra.mxu0 0.0
        %539 = vmatprep.subr.mxu0 0.0
        %540 = vmatpush1.msra.mxu0 0.0
        %541 = vmatprep.subr.mxu0 0.0
        %542 = vmatpush1.msra.mxu0 0.0
        %543 = vmatprep.subr.mxu0 0.0
        %544 = vmatpush1.msra.mxu0 0.0
        %545 = vmatprep.subr.mxu0 0.0
        %546 = vmatpush1.msra.mxu0 0.0
        %547 = vmatprep.subr.mxu0 0.0
        %548 = vmatpush1.msra.mxu0 0.0
        %549 = vmatprep.subr.mxu0 0.0
        %550 = vmatpush1.msra.mxu0 0.0
        %551 = vmatprep.subr.mxu0 0.0
        %552 = vmatpush1.msra.mxu0 0.0
        %553 = vmatprep.subr.mxu0 0.0
        %554 = vmatpush1.msra.mxu0 0.0
        %555 = vmatprep.subr.mxu0 0.0
        %556 = vmatpush1.msra.mxu0 0.0
        %557 = vmatprep.subr.mxu0 0.0
        %558 = vmatpush1.msra.mxu0 0.0
        %559 = vmatprep.subr.mxu0 0.0
        %560 = vmatpush1.msra.mxu0 0.0
        %561 = vmatprep.subr.mxu0 0.0
        %562 = vmatpush1.msra.mxu0 0.0
        %563 = vmatprep.subr.mxu0 0.0
        %564 = vmatpush1.msra.mxu0 0.0
        %565 = vmatprep.subr.mxu0 0.0
        %566 = vmatpush1.msra.mxu0 0.0
        %567 = vmatprep.subr.mxu0 0.0
        %568 = vmatpush1.msra.mxu0 0.0
        %569 = vmatprep.subr.mxu0 0.0
        %570 = vmatpush1.msra.mxu0 0.0
        %571 = vmatprep.subr.mxu0 0.0
        %572 = vmatpush1.msra.mxu0 0.0
        %573 = vmatprep.subr.mxu0 0.0
        %574 = vmatpush1.msra.mxu0 0.0
        %575 = vmatprep.subr.mxu0 0.0
        %576 = vmatpush1.msra.mxu0 0.0
        %577 = vmatprep.mubr.f32.mxu0 0.0
        %578 = vmatmul.mubr.f32.gmra.mrb[0].mxu0 %v466
        %v579 = vpop.f32.mrb[0].mxu0
        %v580 = vadd.f32 0.0, %v579
        %v581 = vpop.f32.mrb[0].mxu0
        %v582 = vadd.f32 0.0, %v581
        %583 = vmatprep.mubr.f32.mxu0 0.0
        %584 = vmatmul.mubr.f32.gmra.mrb[0].mxu0 %v469
        %v585 = vpop.f32.mrb[0].mxu0
        %v586 = vadd.f32 0.0, %v585
        %v587 = vpop.f32.mrb[0].mxu0
        %v588 = vadd.f32 0.0, %v587
        %589 = vmatprep.mubr.f32.mxu0 0.0
        %590 = vmatmul.mubr.f32.gmra.mrb[0].mxu0 %v472
        %v591 = vpop.f32.mrb[0].mxu0
        %v592 = vadd.f32 0.0, %v591
        %v593 = vpop.f32.mrb[0].mxu0
        %v594 = vadd.f32 0.0, %v593
        %595 = vmatprep.mubr.f32.mxu0 0.0
        %596 = vmatmul.mubr.f32.gmra.mrb[0].mxu0 %v475
        %v597 = vpop.f32.mrb[0].mxu0
        %v598 = vadd.f32 0.0, %v597
        %v599 = vpop.f32.mrb[0].mxu0
        %v600 = vadd.f32 0.0, %v599
        %601 = vmatprep.mubr.f32.mxu0 0.0
        %602 = vmatmul.mubr.f32.gmra.mrb[0].mxu0 %v478
        %v603 = vpop.f32.mrb[0].mxu0
        %v604 = vadd.f32 0.0, %v603
        %v605 = vpop.f32.mrb[0].mxu0
        %v606 = vadd.f32 0.0, %v605
        %607 = vmatprep.mubr.f32.mxu0 0.0
        %608 = vmatmul.mubr.f32.gmra.mrb[0].mxu0 %v481
        %v609 = vpop.f32.mrb[0].mxu0
        %v610 = vadd.f32 0.0, %v609
        %v611 = vpop.f32.mrb[0].mxu0
        %v612 = vadd.f32 0.0, %v611
        %613 = vmatprep.mubr.f32.mxu0 0.0
        %614 = vmatmul.mubr.f32.gmra.mrb[0].mxu0 %v484
        %v615 = vpop.f32.mrb[0].mxu0
        %v616 = vadd.f32 0.0, %v615
        %v617 = vpop.f32.mrb[0].mxu0
        %v618 = vadd.f32 0.0, %v617
        %619 = vmatprep.mubr.f32.mxu0 0.0
        %620 = vmatmul.mubr.f32.gmra.mrb[0].mxu0 %v487
        %v621 = vpop.f32.mrb[0].mxu0
        %v622 = vadd.f32 0.0, %v621
        %v623 = vpop.f32.mrb[0].mxu0
        %v624 = vadd.f32 0.0, %v623
        %625 = vmatprep.mubr.f32.mxu0 0.0
        %626 = vmatmul.mubr.f32.gmra.mrb[0].mxu0 %v490
        %v627 = vpop.f32.mrb[0].mxu0
        %v628 = vadd.f32 0.0, %v627
        %v629 = vpop.f32.mrb[0].mxu0
        %v630 = vadd.f32 0.0, %v629
        %631 = vmatprep.mubr.f32.mxu0 0.0
        %632 = vmatmul.mubr.f32.gmra.mrb[0].mxu0 %v493
        %v633 = vpop.f32.mrb[0].mxu0
        %v634 = vadd.f32 0.0, %v633
        %v635 = vpop.f32.mrb[0].mxu0
        %v636 = vadd.f32 0.0, %v635
        %637 = vmatprep.mubr.f32.mxu0 0.0
        %638 = vmatmul.mubr.f32.gmra.mrb[0].mxu0 %v496
        %v639 = vpop.f32.mrb[0].mxu0
        %v640 = vadd.f32 0.0, %v639
        %v641 = vpop.f32.mrb[0].mxu0
        %v642 = vadd.f32 0.0, %v641
        %643 = vmatprep.mubr.f32.mxu0 0.0
        %644 = vmatmul.mubr.f32.gmra.mrb[0].mxu0 %v499
        %v645 = vpop.f32.mrb[0].mxu0
        %v646 = vadd.f32 0.0, %v645
        %v647 = vpop.f32.mrb[0].mxu0
        %v648 = vadd.f32 0.0, %v647
        %649 = vmatprep.mubr.f32.mxu0 0.0
        %650 = vmatmul.mubr.f32.gmra.mrb[0].mxu0 %v502
        %v651 = vpop.f32.mrb[0].mxu0
        %v652 = vadd.f32 0.0, %v651
        %v653 = vpop.f32.mrb[0].mxu0
        %v654 = vadd.f32 0.0, %v653
        %655 = vmatprep.mubr.f32.mxu0 0.0
        %656 = vmatmul.mubr.f32.gmra.mrb[0].mxu0 %v505
        %v657 = vpop.f32.mrb[0].mxu0
        %v658 = vadd.f32 0.0, %v657
        %v659 = vpop.f32.mrb[0].mxu0
        %v660 = vadd.f32 0.0, %v659
        %661 = vmatprep.mubr.f32.mxu0 0.0
        %662 = vmatmul.mubr.f32.gmra.mrb[0].mxu0 %v508
        %v663 = vpop.f32.mrb[0].mxu0
        %v664 = vadd.f32 0.0, %v663
        %v665 = vpop.f32.mrb[0].mxu0
        %v666 = vadd.f32 0.0, %v665
        %667 = vmatprep.mubr.f32.mxu0 0.0
        %668 = vmatmul.mubr.f32.gmra.mrb[0].mxu0 %v511
        %v669 = vpop.f32.mrb[0].mxu0
        %v670 = vadd.f32 0.0, %v669
        %v671 = vpop.f32.mrb[0].mxu0
        %v672 = vadd.f32 0.0, %v671
        %673 = vdwg.mxu0
        %v674 = vld [vmem:[#allocation8] sm:$0xff]
        %v675 = vld [vmem:[#allocation8 + $0x8] sm:$0xff]
        %v676 = vld [vmem:[#allocation8 + $0x10] sm:$0xff]
        %v677 = vld [vmem:[#allocation8 + $0x18] sm:$0xff]
        %v678 = vld [vmem:[#allocation8 + $0x20] sm:$0xff]
        %v679 = vld [vmem:[#allocation8 + $0x28] sm:$0xff]
        %v680 = vld [vmem:[#allocation8 + $0x30] sm:$0xff]
        %v681 = vld [vmem:[#allocation8 + $0x38] sm:$0xff]
        %v682 = vld [vmem:[#allocation8 + $0x40] sm:$0xff]
        %v683 = vld [vmem:[#allocation8 + $0x48] sm:$0xff]
        %v684 = vld [vmem:[#allocation8 + $0x50] sm:$0xff]
        %v685 = vld [vmem:[#allocation8 + $0x58] sm:$0xff]
        %v686 = vld [vmem:[#allocation8 + $0x60] sm:$0xff]
        %v687 = vld [vmem:[#allocation8 + $0x68] sm:$0xff]
        %v688 = vld [vmem:[#allocation8 + $0x70] sm:$0xff]
        %v689 = vld [vmem:[#allocation8 + $0x78] sm:$0xff]
        %v690 = vld [vmem:[#allocation8 + $0x80] sm:$0xff]
        %v691 = vld [vmem:[#allocation8 + $0x88] sm:$0xff]
        %v692 = vld [vmem:[#allocation8 + $0x90] sm:$0xff]
        %v693 = vld [vmem:[#allocation8 + $0x98] sm:$0xff]
        %v694 = vld [vmem:[#allocation8 + $0xa0] sm:$0xff]
        %v695 = vld [vmem:[#allocation8 + $0xa8] sm:$0xff]
        %v696 = vld [vmem:[#allocation8 + $0xb0] sm:$0xff]
        %v697 = vld [vmem:[#allocation8 + $0xb8] sm:$0xff]
        %v698 = vld [vmem:[#allocation8 + $0xc0] sm:$0xff]
        %v699 = vld [vmem:[#allocation8 + $0xc8] sm:$0xff]
        %v700 = vld [vmem:[#allocation8 + $0xd0] sm:$0xff]
        %v701 = vld [vmem:[#allocation8 + $0xd8] sm:$0xff]
        %v702 = vld [vmem:[#allocation8 + $0xe0] sm:$0xff]
        %v703 = vld [vmem:[#allocation8 + $0xe8] sm:$0xff]
        %v704 = vld [vmem:[#allocation8 + $0xf0] sm:$0xff]
        %v705 = vld [vmem:[#allocation8 + $0xf8] sm:$0xff]
        %v706 = vmul.f32 %v580, %v674
        %v707 = vmul.f32 %v582, %v675
        %v708 = vmul.f32 %v586, %v676
        %v709 = vmul.f32 %v588, %v677
        %v710 = vmul.f32 %v592, %v678
        %v711 = vmul.f32 %v594, %v679
        %v712 = vmul.f32 %v598, %v680
        %v713 = vmul.f32 %v600, %v681
        %v714 = vmul.f32 %v604, %v682
        %v715 = vmul.f32 %v606, %v683
        %v716 = vmul.f32 %v610, %v684
        %v717 = vmul.f32 %v612, %v685
        %v718 = vmul.f32 %v616, %v686
        %v719 = vmul.f32 %v618, %v687
        %v720 = vmul.f32 %v622, %v688
        %v721 = vmul.f32 %v624, %v689
        %v722 = vmul.f32 %v628, %v690
        %v723 = vmul.f32 %v630, %v691
        %v724 = vmul.f32 %v634, %v692
        %v725 = vmul.f32 %v636, %v693
        %v726 = vmul.f32 %v640, %v694
        %v727 = vmul.f32 %v642, %v695
        %v728 = vmul.f32 %v646, %v696
        %v729 = vmul.f32 %v648, %v697
        %v730 = vmul.f32 %v652, %v698
        %v731 = vmul.f32 %v654, %v699
        %v732 = vmul.f32 %v658, %v700
        %v733 = vmul.f32 %v660, %v701
        %v734 = vmul.f32 %v664, %v702
        %v735 = vmul.f32 %v666, %v703
        %v736 = vmul.f32 %v670, %v704
        %v737 = vmul.f32 %v672, %v705
        %v738 = vrot.slane %v332, 4
        %v739 = vadd.f32 %v332, %v738
        %v740 = vrot.slane %v739, 2
        %v741 = vadd.f32 %v739, %v740
        %v742 = vrot.slane %v741, 1
        %v743 = vadd.f32 %v741, %v742
        %744 = vmatprep.subr.mxu0 %v707
        %745 = vmatpush1.msra.mxu0 %v706
        %746 = vmatprep.subr.mxu0 %v709
        %747 = vmatpush1.msra.mxu0 %v708
        %748 = vmatprep.subr.mxu0 %v711
        %749 = vmatpush1.msra.mxu0 %v710
        %750 = vmatprep.subr.mxu0 %v713
        %751 = vmatpush1.msra.mxu0 %v712
        %752 = vmatprep.subr.mxu0 %v715
        %753 = vmatpush1.msra.mxu0 %v714
        %754 = vmatprep.subr.mxu0 %v717
        %755 = vmatpush1.msra.mxu0 %v716
        %756 = vmatprep.subr.mxu0 %v719
        %757 = vmatpush1.msra.mxu0 %v718
        %758 = vmatprep.subr.mxu0 %v721
        %759 = vmatpush1.msra.mxu0 %v720
        %760 = vmatprep.subr.mxu0 %v723
        %761 = vmatpush1.msra.mxu0 %v722
        %762 = vmatprep.subr.mxu0 %v725
        %763 = vmatpush1.msra.mxu0 %v724
        %764 = vmatprep.subr.mxu0 %v727
        %765 = vmatpush1.msra.mxu0 %v726
        %766 = vmatprep.subr.mxu0 %v729
        %767 = vmatpush1.msra.mxu0 %v728
        %768 = vmatprep.subr.mxu0 %v731
        %769 = vmatpush1.msra.mxu0 %v730
        %770 = vmatprep.subr.mxu0 %v733
        %771 = vmatpush1.msra.mxu0 %v732
        %772 = vmatprep.subr.mxu0 %v735
        %773 = vmatpush1.msra.mxu0 %v734
        %774 = vmatprep.subr.mxu0 %v737
        %775 = vmatpush1.msra.mxu0 %v736
        %776 = vmatprep.subr.mxu0 0.0
        %777 = vmatpush1.msra.mxu0 0.0
        %778 = vmatprep.subr.mxu0 0.0
        %779 = vmatpush1.msra.mxu0 0.0
        %780 = vmatprep.subr.mxu0 0.0
        %781 = vmatpush1.msra.mxu0 0.0
        %782 = vmatprep.subr.mxu0 0.0
        %783 = vmatpush1.msra.mxu0 0.0
        %784 = vmatprep.subr.mxu0 0.0
        %785 = vmatpush1.msra.mxu0 0.0
        %786 = vmatprep.subr.mxu0 0.0
        %787 = vmatpush1.msra.mxu0 0.0
        %788 = vmatprep.subr.mxu0 0.0
        %789 = vmatpush1.msra.mxu0 0.0
        %790 = vmatprep.subr.mxu0 0.0
        %791 = vmatpush1.msra.mxu0 0.0
        %792 = vmatprep.subr.mxu0 0.0
        %793 = vmatpush1.msra.mxu0 0.0
        %794 = vmatprep.subr.mxu0 0.0
        %795 = vmatpush1.msra.mxu0 0.0
        %796 = vmatprep.subr.mxu0 0.0
        %797 = vmatpush1.msra.mxu0 0.0
        %798 = vmatprep.subr.mxu0 0.0
        %799 = vmatpush1.msra.mxu0 0.0
        %800 = vmatprep.subr.mxu0 0.0
        %801 = vmatpush1.msra.mxu0 0.0
        %802 = vmatprep.subr.mxu0 0.0
        %803 = vmatpush1.msra.mxu0 0.0
        %804 = vmatprep.subr.mxu0 0.0
        %805 = vmatpush1.msra.mxu0 0.0
        %806 = vmatprep.subr.mxu0 0.0
        %807 = vmatpush1.msra.mxu0 0.0
        %808 = vmatprep.mubr.f32.mxu0 0.0
        %809 = vmatmul.mubr.f32.gmra.mrb[0].mxu0 %v430
        %v810 = vpop.f32.mrb[0].mxu0
        %v811 = vadd.f32 0.0, %v810
        %v812 = vpop.f32.mrb[0].mxu0
        %v813 = vadd.f32 0.0, %v812
        %814 = vdwg.mxu0
        %v815 = vadd.f32 %v811, %v743
        %v816 = vld [vmem:[%s283] sm:$0x1]
        %v818 = vlaneseq
        %v819 = vshrl.u32 %v818, 7
        %v820 = vsub.s32 0, %v819
        %v821 = vrot.slane %v816, %v820
        %v823 = vadd.f32 %v813, %v821
        %vm824 = vcmp.eq.f32.partialorder %v823, 0.0
        %v825 = vsel %vm824, 1.0, %v823
        %v826 = vrcp.pop %v825
        %v827 = vmul.f32 %v815, %v826
        %v828 = vld [vmem:[#allocation10] sm:$0xff]
        %v829 = vld [vmem:[#allocation10 + $0x8] sm:$0xff]
        %v830 = vld [vmem:[#allocation10 + $0x10] sm:$0xff]
        %v831 = vld [vmem:[#allocation10 + $0x18] sm:$0xff]
        %v832 = vld [vmem:[#allocation10 + $0x20] sm:$0xff]
        %v833 = vld [vmem:[#allocation10 + $0x28] sm:$0xff]
        %v834 = vld [vmem:[#allocation10 + $0x30] sm:$0xff]
        %v835 = vld [vmem:[#allocation10 + $0x38] sm:$0xff]
        %v836 = vld [vmem:[#allocation10 + $0x40] sm:$0xff]
        %v837 = vld [vmem:[#allocation10 + $0x48] sm:$0xff]
        %v838 = vld [vmem:[#allocation10 + $0x50] sm:$0xff]
        %v839 = vld [vmem:[#allocation10 + $0x58] sm:$0xff]
        %v840 = vld [vmem:[#allocation10 + $0x60] sm:$0xff]
        %v841 = vld [vmem:[#allocation10 + $0x68] sm:$0xff]
        %v842 = vld [vmem:[#allocation10 + $0x70] sm:$0xff]
        %v843 = vld [vmem:[#allocation10 + $0x78] sm:$0xff]
        %844 = vmatprep.subr.mxu0 0.0
        %845 = vmatpush1.msra.mxu0 %v828
        %846 = vmatprep.subr.mxu0 0.0
        %847 = vmatpush1.msra.mxu0 %v829
        %848 = vmatprep.subr.mxu0 0.0
        %849 = vmatpush1.msra.mxu0 %v830
        %850 = vmatprep.subr.mxu0 0.0
        %851 = vmatpush1.msra.mxu0 %v831
        %852 = vmatprep.subr.mxu0 0.0
        %853 = vmatpush1.msra.mxu0 %v832
        %854 = vmatprep.subr.mxu0 0.0
        %855 = vmatpush1.msra.mxu0 %v833
        %856 = vmatprep.subr.mxu0 0.0
        %857 = vmatpush1.msra.mxu0 %v834
        %858 = vmatprep.subr.mxu0 0.0
        %859 = vmatpush1.msra.mxu0 %v835
        %860 = vmatprep.subr.mxu0 0.0
        %861 = vmatpush1.msra.mxu0 %v836
        %862 = vmatprep.subr.mxu0 0.0
        %863 = vmatpush1.msra.mxu0 %v837
        %864 = vmatprep.subr.mxu0 0.0
        %865 = vmatpush1.msra.mxu0 %v838
        %866 = vmatprep.subr.mxu0 0.0
        %867 = vmatpush1.msra.mxu0 %v839
        %868 = vmatprep.subr.mxu0 0.0
        %869 = vmatpush1.msra.mxu0 %v840
        %870 = vmatprep.subr.mxu0 0.0
        %871 = vmatpush1.msra.mxu0 %v841
        %872 = vmatprep.subr.mxu0 0.0
        %873 = vmatpush1.msra.mxu0 %v842
        %874 = vmatprep.subr.mxu0 0.0
        %875 = vmatpush1.msra.mxu0 %v843
        %876 = vmatprep.subr.mxu0 0.0
        %877 = vmatpush1.msra.mxu0 0.0
        %878 = vmatprep.subr.mxu0 0.0
        %879 = vmatpush1.msra.mxu0 0.0
        %880 = vmatprep.subr.mxu0 0.0
        %881 = vmatpush1.msra.mxu0 0.0
        %882 = vmatprep.subr.mxu0 0.0
        %883 = vmatpush1.msra.mxu0 0.0
        %884 = vmatprep.subr.mxu0 0.0
        %885 = vmatpush1.msra.mxu0 0.0
        %886 = vmatprep.subr.mxu0 0.0
        %887 = vmatpush1.msra.mxu0 0.0
        %888 = vmatprep.subr.mxu0 0.0
        %889 = vmatpush1.msra.mxu0 0.0
        %890 = vmatprep.subr.mxu0 0.0
        %891 = vmatpush1.msra.mxu0 0.0
        %892 = vmatprep.subr.mxu0 0.0
        %893 = vmatpush1.msra.mxu0 0.0
        %894 = vmatprep.subr.mxu0 0.0
        %895 = vmatpush1.msra.mxu0 0.0
        %896 = vmatprep.subr.mxu0 0.0
        %897 = vmatpush1.msra.mxu0 0.0
        %898 = vmatprep.subr.mxu0 0.0
        %899 = vmatpush1.msra.mxu0 0.0
        %900 = vmatprep.subr.mxu0 0.0
        %901 = vmatpush1.msra.mxu0 0.0
        %902 = vmatprep.subr.mxu0 0.0
        %903 = vmatpush1.msra.mxu0 0.0
        %904 = vmatprep.subr.mxu0 0.0
        %905 = vmatpush1.msra.mxu0 0.0
        %906 = vmatprep.subr.mxu0 0.0
        %907 = vmatpush1.msra.mxu0 0.0
        %908 = vmatprep.mubr.f32.mxu0 0.0
        %909 = vmatmul.mubr.f32.gmra.mrb[0].mxu0 %v827
        %v910 = vpop.f32.mrb[0].mxu0
        %v911 = vadd.f32 0.0, %v910
        %v912 = vpop.f32.mrb[0].mxu0
        %913 = vdwg.mxu0
        %914 = vst [vmem:[%s326] sm:$0xff] %v911
        %s915 = scalar_lea.vmem %s274, 24 [#allocation2]
        %v916 = vld [vmem:[%s915] sm:$0xff]
        %v917 = vld [vmem:[%s915 + $0x8] sm:$0xff]
        %v918 = vld [vmem:[%s915 + $0x10] sm:$0xff]
        %v919 = vmul.f32 %v916, %v916
        %v920 = vmul.f32 %v917, %v917
        %v921 = vld [vmem:[#allocation7] sm:$0xff]
        %v922 = vld [vmem:[#allocation7 + $0x8] sm:$0xff]
        %v923 = vld [vmem:[#allocation7 + $0x10] sm:$0xff]
        %v924 = vld [vmem:[#allocation7 + $0x18] sm:$0xff]
        %v925 = vld [vmem:[#allocation7 + $0x20] sm:$0xff]
        %v926 = vld [vmem:[#allocation7 + $0x28] sm:$0xff]
        %v927 = vld [vmem:[#allocation7 + $0x30] sm:$0xff]
        %v928 = vld [vmem:[#allocation7 + $0x38] sm:$0xff]
        %v929 = vld [vmem:[#allocation7 + $0x40] sm:$0xff]
        %v930 = vld [vmem:[#allocation7 + $0x48] sm:$0xff]
        %v931 = vld [vmem:[#allocation7 + $0x50] sm:$0xff]
        %v932 = vld [vmem:[#allocation7 + $0x58] sm:$0xff]
        %v933 = vld [vmem:[#allocation7 + $0x60] sm:$0xff]
        %v934 = vld [vmem:[#allocation7 + $0x68] sm:$0xff]
        %v935 = vld [vmem:[#allocation7 + $0x70] sm:$0xff]
        %v936 = vld [vmem:[#allocation7 + $0x78] sm:$0xff]
        %937 = vmatprep.subr.mxu0 0.0
        %938 = vmatpush1.msra.mxu0 %v921
        %939 = vmatprep.subr.mxu0 0.0
        %940 = vmatpush1.msra.mxu0 %v922
        %941 = vmatprep.subr.mxu0 0.0
        %942 = vmatpush1.msra.mxu0 %v923
        %943 = vmatprep.subr.mxu0 0.0
        %944 = vmatpush1.msra.mxu0 %v924
        %945 = vmatprep.subr.mxu0 0.0
        %946 = vmatpush1.msra.mxu0 %v925
        %947 = vmatprep.subr.mxu0 0.0
        %948 = vmatpush1.msra.mxu0 %v926
        %949 = vmatprep.subr.mxu0 0.0
        %950 = vmatpush1.msra.mxu0 %v927
        %951 = vmatprep.subr.mxu0 0.0
        %952 = vmatpush1.msra.mxu0 %v928
        %953 = vmatprep.subr.mxu0 0.0
        %954 = vmatpush1.msra.mxu0 %v929
        %955 = vmatprep.subr.mxu0 0.0
        %956 = vmatpush1.msra.mxu0 %v930
        %957 = vmatprep.subr.mxu0 0.0
        %958 = vmatpush1.msra.mxu0 %v931
        %959 = vmatprep.subr.mxu0 0.0
        %960 = vmatpush1.msra.mxu0 %v932
        %961 = vmatprep.subr.mxu0 0.0
        %962 = vmatpush1.msra.mxu0 %v933
        %963 = vmatprep.subr.mxu0 0.0
        %964 = vmatpush1.msra.mxu0 %v934
        %965 = vmatprep.subr.mxu0 0.0
        %966 = vmatpush1.msra.mxu0 %v935
        %967 = vmatprep.subr.mxu0 0.0
        %968 = vmatpush1.msra.mxu0 %v936
        %969 = vmatprep.subr.mxu0 0.0
        %970 = vmatpush1.msra.mxu0 0.0
        %971 = vmatprep.subr.mxu0 0.0
        %972 = vmatpush1.msra.mxu0 0.0
        %973 = vmatprep.subr.mxu0 0.0
        %974 = vmatpush1.msra.mxu0 0.0
        %975 = vmatprep.subr.mxu0 0.0
        %976 = vmatpush1.msra.mxu0 0.0
        %977 = vmatprep.subr.mxu0 0.0
        %978 = vmatpush1.msra.mxu0 0.0
        %979 = vmatprep.subr.mxu0 0.0
        %980 = vmatpush1.msra.mxu0 0.0
        %981 = vmatprep.subr.mxu0 0.0
        %982 = vmatpush1.msra.mxu0 0.0
        %983 = vmatprep.subr.mxu0 0.0
        %984 = vmatpush1.msra.mxu0 0.0
        %985 = vmatprep.subr.mxu0 0.0
        %986 = vmatpush1.msra.mxu0 0.0
        %987 = vmatprep.subr.mxu0 0.0
        %988 = vmatpush1.msra.mxu0 0.0
        %989 = vmatprep.subr.mxu0 0.0
        %990 = vmatpush1.msra.mxu0 0.0
        %991 = vmatprep.subr.mxu0 0.0
        %992 = vmatpush1.msra.mxu0 0.0
        %993 = vmatprep.subr.mxu0 0.0
        %994 = vmatpush1.msra.mxu0 0.0
        %995 = vmatprep.subr.mxu0 0.0
        %996 = vmatpush1.msra.mxu0 0.0
        %997 = vmatprep.subr.mxu0 0.0
        %998 = vmatpush1.msra.mxu0 0.0
        %999 = vmatprep.subr.mxu0 0.0
        %1000 = vmatpush1.msra.mxu0 0.0
        %1001 = vmatprep.mubr.f32.mxu0 0.0
        %1002 = vmatmul.mubr.f32.gmra.mrb[0].mxu0 %v919
        %v1003 = vpop.f32.mrb[0].mxu0
        %v1004 = vadd.f32 0.0, %v1003
        %v1005 = vpop.f32.mrb[0].mxu0
        %1006 = vmatprep.mubr.f32.mxu0 0.0
        %1007 = vmatmul.mubr.f32.gmra.mrb[0].mxu0 %v920
        %v1008 = vpop.f32.mrb[0].mxu0
        %v1009 = vadd.f32 0.0, %v1008
        %v1010 = vpop.f32.mrb[0].mxu0
        %1011 = vdwg.mxu0
        %v1012 = vmax.f32 %v1004, 1e-12
        %v1013 = vmax.f32 %v1009, 1e-12
        %v1014 = vrsqrt.pop %v1012
        %v1015 = vrsqrt.pop %v1013
        %v1016 = vmul.f32 %v916, %v1014
        %v1017 = vmul.f32 %v917, %v1015
        %1018 = vxpose.xlu0.b32.start [1/16] %v1017, 128
        %1019 = vxpose.xlu0.b32.cont [2/16] 0.0, 128
        %1020 = vxpose.xlu0.b32.cont [3/16] 0.0, 128
        %1021 = vxpose.xlu0.b32.cont [4/16] 0.0, 128
        %1022 = vxpose.xlu0.b32.cont [5/16] 0.0, 128
        %1023 = vxpose.xlu0.b32.cont [6/16] 0.0, 128
        %1024 = vxpose.xlu0.b32.cont [7/16] 0.0, 128
        %1025 = vxpose.xlu0.b32.cont [8/16] 0.0, 128
        %1026 = vxpose.xlu0.b32.cont [9/16] 0.0, 128
        %1027 = vxpose.xlu0.b32.cont [10/16] 0.0, 128
        %1028 = vxpose.xlu0.b32.cont [11/16] 0.0, 128
        %1029 = vxpose.xlu0.b32.cont [12/16] 0.0, 128
        %1030 = vxpose.xlu0.b32.cont [13/16] 0.0, 128
        %1031 = vxpose.xlu0.b32.cont [14/16] 0.0, 128
        %1032 = vxpose.xlu0.b32.cont [15/16] 0.0, 128
        %1033 = vxpose.xlu0.b32.end [16/16] 0.0, 128
        %v1034 = vpop.trf.xlu0
        %v1035 = vpop.trf.xlu0
        %v1036 = vpop.trf.xlu0
        %v1037 = vpop.trf.xlu0
        %v1038 = vpop.trf.xlu0
        %v1039 = vpop.trf.xlu0
        %v1040 = vpop.trf.xlu0
        %v1041 = vpop.trf.xlu0
        %v1042 = vpop.trf.xlu0
        %v1043 = vpop.trf.xlu0
        %v1044 = vpop.trf.xlu0
        %v1045 = vpop.trf.xlu0
        %v1046 = vpop.trf.xlu0
        %v1047 = vpop.trf.xlu0
        %v1048 = vpop.trf.xlu0
        %v1049 = vpop.trf.xlu0
        %v1051 = vsel %vm464, %v1034, 0
        %v1054 = vsel %vm464, %v1035, 0
        %v1057 = vsel %vm464, %v1036, 0
        %v1060 = vsel %vm464, %v1037, 0
        %v1063 = vsel %vm464, %v1038, 0
        %v1066 = vsel %vm464, %v1039, 0
        %v1069 = vsel %vm464, %v1040, 0
        %v1072 = vsel %vm464, %v1041, 0
        %v1075 = vsel %vm464, %v1042, 0
        %v1078 = vsel %vm464, %v1043, 0
        %v1081 = vsel %vm464, %v1044, 0
        %v1084 = vsel %vm464, %v1045, 0
        %v1087 = vsel %vm464, %v1046, 0
        %v1090 = vsel %vm464, %v1047, 0
        %v1093 = vsel %vm464, %v1048, 0
        %v1096 = vsel %vm464, %v1049, 0
        %1098 = vmatprep.subr.mxu0 1.0
        %1099 = vmatpush1.msra.mxu0 %v918
        %1100 = vmatprep.subr.mxu0 0.0
        %1101 = vmatpush1.msra.mxu0 0.0
        %1102 = vmatprep.subr.mxu0 0.0
        %1103 = vmatpush1.msra.mxu0 0.0
        %1104 = vmatprep.subr.mxu0 0.0
        %1105 = vmatpush1.msra.mxu0 0.0
        %1106 = vmatprep.subr.mxu0 0.0
        %1107 = vmatpush1.msra.mxu0 0.0
        %1108 = vmatprep.subr.mxu0 0.0
        %1109 = vmatpush1.msra.mxu0 0.0
        %1110 = vmatprep.subr.mxu0 0.0
        %1111 = vmatpush1.msra.mxu0 0.0
        %1112 = vmatprep.subr.mxu0 0.0
        %1113 = vmatpush1.msra.mxu0 0.0
        %1114 = vmatprep.subr.mxu0 0.0
        %1115 = vmatpush1.msra.mxu0 0.0
        %1116 = vmatprep.subr.mxu0 0.0
        %1117 = vmatpush1.msra.mxu0 0.0
        %1118 = vmatprep.subr.mxu0 0.0
        %1119 = vmatpush1.msra.mxu0 0.0
        %1120 = vmatprep.subr.mxu0 0.0
        %1121 = vmatpush1.msra.mxu0 0.0
        %1122 = vmatprep.subr.mxu0 0.0
        %1123 = vmatpush1.msra.mxu0 0.0
        %1124 = vmatprep.subr.mxu0 0.0
        %1125 = vmatpush1.msra.mxu0 0.0
        %1126 = vmatprep.subr.mxu0 0.0
        %1127 = vmatpush1.msra.mxu0 0.0
        %1128 = vmatprep.subr.mxu0 0.0
        %1129 = vmatpush1.msra.mxu0 0.0
        %1130 = vmatprep.subr.mxu0 0.0
        %1131 = vmatpush1.msra.mxu0 0.0
        %1132 = vmatprep.subr.mxu0 0.0
        %1133 = vmatpush1.msra.mxu0 0.0
        %1134 = vmatprep.subr.mxu0 0.0
        %1135 = vmatpush1.msra.mxu0 0.0
        %1136 = vmatprep.subr.mxu0 0.0
        %1137 = vmatpush1.msra.mxu0 0.0
        %1138 = vmatprep.subr.mxu0 0.0
        %1139 = vmatpush1.msra.mxu0 0.0
        %1140 = vmatprep.subr.mxu0 0.0
        %1141 = vmatpush1.msra.mxu0 0.0
        %1142 = vmatprep.subr.mxu0 0.0
        %1143 = vmatpush1.msra.mxu0 0.0
        %1144 = vmatprep.subr.mxu0 0.0
        %1145 = vmatpush1.msra.mxu0 0.0
        %1146 = vmatprep.subr.mxu0 0.0
        %1147 = vmatpush1.msra.mxu0 0.0
        %1148 = vmatprep.subr.mxu0 0.0
        %1149 = vmatpush1.msra.mxu0 0.0
        %1150 = vmatprep.subr.mxu0 0.0
        %1151 = vmatpush1.msra.mxu0 0.0
        %1152 = vmatprep.subr.mxu0 0.0
        %1153 = vmatpush1.msra.mxu0 0.0
        %1154 = vmatprep.subr.mxu0 0.0
        %1155 = vmatpush1.msra.mxu0 0.0
        %1156 = vmatprep.subr.mxu0 0.0
        %1157 = vmatpush1.msra.mxu0 0.0
        %1158 = vmatprep.subr.mxu0 0.0
        %1159 = vmatpush1.msra.mxu0 0.0
        %1160 = vmatprep.subr.mxu0 0.0
        %1161 = vmatpush1.msra.mxu0 0.0
        %1162 = vmatprep.mubr.f32.mxu0 0.0
        %1163 = vmatmul.mubr.f32.gmra.mrb[0].mxu0 %v1051
        %v1164 = vpop.f32.mrb[0].mxu0
        %v1165 = vadd.f32 0.0, %v1164
        %v1166 = vpop.f32.mrb[0].mxu0
        %v1167 = vadd.f32 0.0, %v1166
        %1168 = vmatprep.mubr.f32.mxu0 0.0
        %1169 = vmatmul.mubr.f32.gmra.mrb[0].mxu0 %v1054
        %v1170 = vpop.f32.mrb[0].mxu0
        %v1171 = vadd.f32 0.0, %v1170
        %v1172 = vpop.f32.mrb[0].mxu0
        %v1173 = vadd.f32 0.0, %v1172
        %1174 = vmatprep.mubr.f32.mxu0 0.0
        %1175 = vmatmul.mubr.f32.gmra.mrb[0].mxu0 %v1057
        %v1176 = vpop.f32.mrb[0].mxu0
        %v1177 = vadd.f32 0.0, %v1176
        %v1178 = vpop.f32.mrb[0].mxu0
        %v1179 = vadd.f32 0.0, %v1178
        %1180 = vmatprep.mubr.f32.mxu0 0.0
        %1181 = vmatmul.mubr.f32.gmra.mrb[0].mxu0 %v1060
        %v1182 = vpop.f32.mrb[0].mxu0
        %v1183 = vadd.f32 0.0, %v1182
        %v1184 = vpop.f32.mrb[0].mxu0
        %v1185 = vadd.f32 0.0, %v1184
        %1186 = vmatprep.mubr.f32.mxu0 0.0
        %1187 = vmatmul.mubr.f32.gmra.mrb[0].mxu0 %v1063
        %v1188 = vpop.f32.mrb[0].mxu0
        %v1189 = vadd.f32 0.0, %v1188
        %v1190 = vpop.f32.mrb[0].mxu0
        %v1191 = vadd.f32 0.0, %v1190
        %1192 = vmatprep.mubr.f32.mxu0 0.0
        %1193 = vmatmul.mubr.f32.gmra.mrb[0].mxu0 %v1066
        %v1194 = vpop.f32.mrb[0].mxu0
        %v1195 = vadd.f32 0.0, %v1194
        %v1196 = vpop.f32.mrb[0].mxu0
        %v1197 = vadd.f32 0.0, %v1196
        %1198 = vmatprep.mubr.f32.mxu0 0.0
        %1199 = vmatmul.mubr.f32.gmra.mrb[0].mxu0 %v1069
        %v1200 = vpop.f32.mrb[0].mxu0
        %v1201 = vadd.f32 0.0, %v1200
        %v1202 = vpop.f32.mrb[0].mxu0
        %v1203 = vadd.f32 0.0, %v1202
        %1204 = vmatprep.mubr.f32.mxu0 0.0
        %1205 = vmatmul.mubr.f32.gmra.mrb[0].mxu0 %v1072
        %v1206 = vpop.f32.mrb[0].mxu0
        %v1207 = vadd.f32 0.0, %v1206
        %v1208 = vpop.f32.mrb[0].mxu0
        %v1209 = vadd.f32 0.0, %v1208
        %1210 = vmatprep.mubr.f32.mxu0 0.0
        %1211 = vmatmul.mubr.f32.gmra.mrb[0].mxu0 %v1075
        %v1212 = vpop.f32.mrb[0].mxu0
        %v1213 = vadd.f32 0.0, %v1212
        %v1214 = vpop.f32.mrb[0].mxu0
        %v1215 = vadd.f32 0.0, %v1214
        %1216 = vmatprep.mubr.f32.mxu0 0.0
        %1217 = vmatmul.mubr.f32.gmra.mrb[0].mxu0 %v1078
        %v1218 = vpop.f32.mrb[0].mxu0
        %v1219 = vadd.f32 0.0, %v1218
        %v1220 = vpop.f32.mrb[0].mxu0
        %v1221 = vadd.f32 0.0, %v1220
        %1222 = vmatprep.mubr.f32.mxu0 0.0
        %1223 = vmatmul.mubr.f32.gmra.mrb[0].mxu0 %v1081
        %v1224 = vpop.f32.mrb[0].mxu0
        %v1225 = vadd.f32 0.0, %v1224
        %v1226 = vpop.f32.mrb[0].mxu0
        %v1227 = vadd.f32 0.0, %v1226
        %1228 = vmatprep.mubr.f32.mxu0 0.0
        %1229 = vmatmul.mubr.f32.gmra.mrb[0].mxu0 %v1084
        %v1230 = vpop.f32.mrb[0].mxu0
        %v1231 = vadd.f32 0.0, %v1230
        %v1232 = vpop.f32.mrb[0].mxu0
        %v1233 = vadd.f32 0.0, %v1232
        %1234 = vmatprep.mubr.f32.mxu0 0.0
        %1235 = vmatmul.mubr.f32.gmra.mrb[0].mxu0 %v1087
        %v1236 = vpop.f32.mrb[0].mxu0
        %v1237 = vadd.f32 0.0, %v1236
        %v1238 = vpop.f32.mrb[0].mxu0
        %v1239 = vadd.f32 0.0, %v1238
        %1240 = vmatprep.mubr.f32.mxu0 0.0
        %1241 = vmatmul.mubr.f32.gmra.mrb[0].mxu0 %v1090
        %v1242 = vpop.f32.mrb[0].mxu0
        %v1243 = vadd.f32 0.0, %v1242
        %v1244 = vpop.f32.mrb[0].mxu0
        %v1245 = vadd.f32 0.0, %v1244
        %1246 = vmatprep.mubr.f32.mxu0 0.0
        %1247 = vmatmul.mubr.f32.gmra.mrb[0].mxu0 %v1093
        %v1248 = vpop.f32.mrb[0].mxu0
        %v1249 = vadd.f32 0.0, %v1248
        %v1250 = vpop.f32.mrb[0].mxu0
        %v1251 = vadd.f32 0.0, %v1250
        %1252 = vmatprep.mubr.f32.mxu0 0.0
        %1253 = vmatmul.mubr.f32.gmra.mrb[0].mxu0 %v1096
        %v1254 = vpop.f32.mrb[0].mxu0
        %v1255 = vadd.f32 0.0, %v1254
        %v1256 = vpop.f32.mrb[0].mxu0
        %v1257 = vadd.f32 0.0, %v1256
        %1258 = vdwg.mxu0
        %v1259 = vld [vmem:[#allocation8] sm:$0xff]
        %v1260 = vld [vmem:[#allocation8 + $0x8] sm:$0xff]
        %v1261 = vld [vmem:[#allocation8 + $0x10] sm:$0xff]
        %v1262 = vld [vmem:[#allocation8 + $0x18] sm:$0xff]
        %v1263 = vld [vmem:[#allocation8 + $0x20] sm:$0xff]
        %v1264 = vld [vmem:[#allocation8 + $0x28] sm:$0xff]
        %v1265 = vld [vmem:[#allocation8 + $0x30] sm:$0xff]
        %v1266 = vld [vmem:[#allocation8 + $0x38] sm:$0xff]
        %v1267 = vld [vmem:[#allocation8 + $0x40] sm:$0xff]
        %v1268 = vld [vmem:[#allocation8 + $0x48] sm:$0xff]
        %v1269 = vld [vmem:[#allocation8 + $0x50] sm:$0xff]
        %v1270 = vld [vmem:[#allocation8 + $0x58] sm:$0xff]
        %v1271 = vld [vmem:[#allocation8 + $0x60] sm:$0xff]
        %v1272 = vld [vmem:[#allocation8 + $0x68] sm:$0xff]
        %v1273 = vld [vmem:[#allocation8 + $0x70] sm:$0xff]
        %v1274 = vld [vmem:[#allocation8 + $0x78] sm:$0xff]
        %v1275 = vld [vmem:[#allocation8 + $0x80] sm:$0xff]
        %v1276 = vld [vmem:[#allocation8 + $0x88] sm:$0xff]
        %v1277 = vld [vmem:[#allocation8 + $0x90] sm:$0xff]
        %v1278 = vld [vmem:[#allocation8 + $0x98] sm:$0xff]
        %v1279 = vld [vmem:[#allocation8 + $0xa0] sm:$0xff]
        %v1280 = vld [vmem:[#allocation8 + $0xa8] sm:$0xff]
        %v1281 = vld [vmem:[#allocation8 + $0xb0] sm:$0xff]
        %v1282 = vld [vmem:[#allocation8 + $0xb8] sm:$0xff]
        %v1283 = vld [vmem:[#allocation8 + $0xc0] sm:$0xff]
        %v1284 = vld [vmem:[#allocation8 + $0xc8] sm:$0xff]
        %v1285 = vld [vmem:[#allocation8 + $0xd0] sm:$0xff]
        %v1286 = vld [vmem:[#allocation8 + $0xd8] sm:$0xff]
        %v1287 = vld [vmem:[#allocation8 + $0xe0] sm:$0xff]
        %v1288 = vld [vmem:[#allocation8 + $0xe8] sm:$0xff]
        %v1289 = vld [vmem:[#allocation8 + $0xf0] sm:$0xff]
        %v1290 = vld [vmem:[#allocation8 + $0xf8] sm:$0xff]
        %v1291 = vmul.f32 %v1165, %v1259
        %v1292 = vmul.f32 %v1167, %v1260
        %v1293 = vmul.f32 %v1171, %v1261
        %v1294 = vmul.f32 %v1173, %v1262
        %v1295 = vmul.f32 %v1177, %v1263
        %v1296 = vmul.f32 %v1179, %v1264
        %v1297 = vmul.f32 %v1183, %v1265
        %v1298 = vmul.f32 %v1185, %v1266
        %v1299 = vmul.f32 %v1189, %v1267
        %v1300 = vmul.f32 %v1191, %v1268
        %v1301 = vmul.f32 %v1195, %v1269
        %v1302 = vmul.f32 %v1197, %v1270
        %v1303 = vmul.f32 %v1201, %v1271
        %v1304 = vmul.f32 %v1203, %v1272
        %v1305 = vmul.f32 %v1207, %v1273
        %v1306 = vmul.f32 %v1209, %v1274
        %v1307 = vmul.f32 %v1213, %v1275
        %v1308 = vmul.f32 %v1215, %v1276
        %v1309 = vmul.f32 %v1219, %v1277
        %v1310 = vmul.f32 %v1221, %v1278
        %v1311 = vmul.f32 %v1225, %v1279
        %v1312 = vmul.f32 %v1227, %v1280
        %v1313 = vmul.f32 %v1231, %v1281
        %v1314 = vmul.f32 %v1233, %v1282
        %v1315 = vmul.f32 %v1237, %v1283
        %v1316 = vmul.f32 %v1239, %v1284
        %v1317 = vmul.f32 %v1243, %v1285
        %v1318 = vmul.f32 %v1245, %v1286
        %v1319 = vmul.f32 %v1249, %v1287
        %v1320 = vmul.f32 %v1251, %v1288
        %v1321 = vmul.f32 %v1255, %v1289
        %v1322 = vmul.f32 %v1257, %v1290
        %v1323 = vrot.slane %v918, 4
        %v1324 = vadd.f32 %v918, %v1323
        %v1325 = vrot.slane %v1324, 2
        %v1326 = vadd.f32 %v1324, %v1325
        %v1327 = vrot.slane %v1326, 1
        %v1328 = vadd.f32 %v1326, %v1327
        %1329 = vmatprep.subr.mxu0 %v1292
        %1330 = vmatpush1.msra.mxu0 %v1291
        %1331 = vmatprep.subr.mxu0 %v1294
        %1332 = vmatpush1.msra.mxu0 %v1293
        %1333 = vmatprep.subr.mxu0 %v1296
        %1334 = vmatpush1.msra.mxu0 %v1295
        %1335 = vmatprep.subr.mxu0 %v1298
        %1336 = vmatpush1.msra.mxu0 %v1297
        %1337 = vmatprep.subr.mxu0 %v1300
        %1338 = vmatpush1.msra.mxu0 %v1299
        %1339 = vmatprep.subr.mxu0 %v1302
        %1340 = vmatpush1.msra.mxu0 %v1301
        %1341 = vmatprep.subr.mxu0 %v1304
        %1342 = vmatpush1.msra.mxu0 %v1303
        %1343 = vmatprep.subr.mxu0 %v1306
        %1344 = vmatpush1.msra.mxu0 %v1305
        %1345 = vmatprep.subr.mxu0 %v1308
        %1346 = vmatpush1.msra.mxu0 %v1307
        %1347 = vmatprep.subr.mxu0 %v1310
        %1348 = vmatpush1.msra.mxu0 %v1309
        %1349 = vmatprep.subr.mxu0 %v1312
        %1350 = vmatpush1.msra.mxu0 %v1311
        %1351 = vmatprep.subr.mxu0 %v1314
        %1352 = vmatpush1.msra.mxu0 %v1313
        %1353 = vmatprep.subr.mxu0 %v1316
        %1354 = vmatpush1.msra.mxu0 %v1315
        %1355 = vmatprep.subr.mxu0 %v1318
        %1356 = vmatpush1.msra.mxu0 %v1317
        %1357 = vmatprep.subr.mxu0 %v1320
        %1358 = vmatpush1.msra.mxu0 %v1319
        %1359 = vmatprep.subr.mxu0 %v1322
        %1360 = vmatpush1.msra.mxu0 %v1321
        %1361 = vmatprep.subr.mxu0 0.0
        %1362 = vmatpush1.msra.mxu0 0.0
        %1363 = vmatprep.subr.mxu0 0.0
        %1364 = vmatpush1.msra.mxu0 0.0
        %1365 = vmatprep.subr.mxu0 0.0
        %1366 = vmatpush1.msra.mxu0 0.0
        %1367 = vmatprep.subr.mxu0 0.0
        %1368 = vmatpush1.msra.mxu0 0.0
        %1369 = vmatprep.subr.mxu0 0.0
        %1370 = vmatpush1.msra.mxu0 0.0
        %1371 = vmatprep.subr.mxu0 0.0
        %1372 = vmatpush1.msra.mxu0 0.0
        %1373 = vmatprep.subr.mxu0 0.0
        %1374 = vmatpush1.msra.mxu0 0.0
        %1375 = vmatprep.subr.mxu0 0.0
        %1376 = vmatpush1.msra.mxu0 0.0
        %1377 = vmatprep.subr.mxu0 0.0
        %1378 = vmatpush1.msra.mxu0 0.0
        %1379 = vmatprep.subr.mxu0 0.0
        %1380 = vmatpush1.msra.mxu0 0.0
        %1381 = vmatprep.subr.mxu0 0.0
        %1382 = vmatpush1.msra.mxu0 0.0
        %1383 = vmatprep.subr.mxu0 0.0
        %1384 = vmatpush1.msra.mxu0 0.0
        %1385 = vmatprep.subr.mxu0 0.0
        %1386 = vmatpush1.msra.mxu0 0.0
        %1387 = vmatprep.subr.mxu0 0.0
        %1388 = vmatpush1.msra.mxu0 0.0
        %1389 = vmatprep.subr.mxu0 0.0
        %1390 = vmatpush1.msra.mxu0 0.0
        %1391 = vmatprep.subr.mxu0 0.0
        %1392 = vmatpush1.msra.mxu0 0.0
        %1393 = vmatprep.mubr.f32.mxu0 0.0
        %1394 = vmatmul.mubr.f32.gmra.mrb[0].mxu0 %v1016
        %v1395 = vpop.f32.mrb[0].mxu0
        %v1396 = vadd.f32 0.0, %v1395
        %v1397 = vpop.f32.mrb[0].mxu0
        %v1398 = vadd.f32 0.0, %v1397
        %1399 = vdwg.mxu0
        %v1400 = vadd.f32 %v1396, %v1328
        %s1401 = scalar_lea.vmem %s283, 1 [#allocation5]
        %v1402 = vld [vmem:[%s1401] sm:$0x1]
        %v1404 = vlaneseq
        %v1405 = vshrl.u32 %v1404, 7
        %v1406 = vsub.s32 0, %v1405
        %v1407 = vrot.slane %v1402, %v1406
        %v1409 = vadd.f32 %v1398, %v1407
        %vm1410 = vcmp.eq.f32.partialorder %v1409, 0.0
        %v1411 = vsel %vm1410, 1.0, %v1409
        %v1412 = vrcp.pop %v1411
        %v1413 = vmul.f32 %v1400, %v1412
        %v1414 = vld [vmem:[#allocation10] sm:$0xff]
        %v1415 = vld [vmem:[#allocation10 + $0x8] sm:$0xff]
        %v1416 = vld [vmem:[#allocation10 + $0x10] sm:$0xff]
        %v1417 = vld [vmem:[#allocation10 + $0x18] sm:$0xff]
        %v1418 = vld [vmem:[#allocation10 + $0x20] sm:$0xff]
        %v1419 = vld [vmem:[#allocation10 + $0x28] sm:$0xff]
        %v1420 = vld [vmem:[#allocation10 + $0x30] sm:$0xff]
        %v1421 = vld [vmem:[#allocation10 + $0x38] sm:$0xff]
        %v1422 = vld [vmem:[#allocation10 + $0x40] sm:$0xff]
        %v1423 = vld [vmem:[#allocation10 + $0x48] sm:$0xff]
        %v1424 = vld [vmem:[#allocation10 + $0x50] sm:$0xff]
        %v1425 = vld [vmem:[#allocation10 + $0x58] sm:$0xff]
        %v1426 = vld [vmem:[#allocation10 + $0x60] sm:$0xff]
        %v1427 = vld [vmem:[#allocation10 + $0x68] sm:$0xff]
        %v1428 = vld [vmem:[#allocation10 + $0x70] sm:$0xff]
        %v1429 = vld [vmem:[#allocation10 + $0x78] sm:$0xff]
        %1430 = vmatprep.subr.mxu0 0.0
        %1431 = vmatpush1.msra.mxu0 %v1414
        %1432 = vmatprep.subr.mxu0 0.0
        %1433 = vmatpush1.msra.mxu0 %v1415
        %1434 = vmatprep.subr.mxu0 0.0
        %1435 = vmatpush1.msra.mxu0 %v1416
        %1436 = vmatprep.subr.mxu0 0.0
        %1437 = vmatpush1.msra.mxu0 %v1417
        %1438 = vmatprep.subr.mxu0 0.0
        %1439 = vmatpush1.msra.mxu0 %v1418
        %1440 = vmatprep.subr.mxu0 0.0
        %1441 = vmatpush1.msra.mxu0 %v1419
        %1442 = vmatprep.subr.mxu0 0.0
        %1443 = vmatpush1.msra.mxu0 %v1420
        %1444 = vmatprep.subr.mxu0 0.0
        %1445 = vmatpush1.msra.mxu0 %v1421
        %1446 = vmatprep.subr.mxu0 0.0
        %1447 = vmatpush1.msra.mxu0 %v1422
        %1448 = vmatprep.subr.mxu0 0.0
        %1449 = vmatpush1.msra.mxu0 %v1423
        %1450 = vmatprep.subr.mxu0 0.0
        %1451 = vmatpush1.msra.mxu0 %v1424
        %1452 = vmatprep.subr.mxu0 0.0
        %1453 = vmatpush1.msra.mxu0 %v1425
        %1454 = vmatprep.subr.mxu0 0.0
        %1455 = vmatpush1.msra.mxu0 %v1426
        %1456 = vmatprep.subr.mxu0 0.0
        %1457 = vmatpush1.msra.mxu0 %v1427
        %1458 = vmatprep.subr.mxu0 0.0
        %1459 = vmatpush1.msra.mxu0 %v1428
        %1460 = vmatprep.subr.mxu0 0.0
        %1461 = vmatpush1.msra.mxu0 %v1429
        %1462 = vmatprep.subr.mxu0 0.0
        %1463 = vmatpush1.msra.mxu0 0.0
        %1464 = vmatprep.subr.mxu0 0.0
        %1465 = vmatpush1.msra.mxu0 0.0
        %1466 = vmatprep.subr.mxu0 0.0
        %1467 = vmatpush1.msra.mxu0 0.0
        %1468 = vmatprep.subr.mxu0 0.0
        %1469 = vmatpush1.msra.mxu0 0.0
        %1470 = vmatprep.subr.mxu0 0.0
        %1471 = vmatpush1.msra.mxu0 0.0
        %1472 = vmatprep.subr.mxu0 0.0
        %1473 = vmatpush1.msra.mxu0 0.0
        %1474 = vmatprep.subr.mxu0 0.0
        %1475 = vmatpush1.msra.mxu0 0.0
        %1476 = vmatprep.subr.mxu0 0.0
        %1477 = vmatpush1.msra.mxu0 0.0
        %1478 = vmatprep.subr.mxu0 0.0
        %1479 = vmatpush1.msra.mxu0 0.0
        %1480 = vmatprep.subr.mxu0 0.0
        %1481 = vmatpush1.msra.mxu0 0.0
        %1482 = vmatprep.subr.mxu0 0.0
        %1483 = vmatpush1.msra.mxu0 0.0
        %1484 = vmatprep.subr.mxu0 0.0
        %1485 = vmatpush1.msra.mxu0 0.0
        %1486 = vmatprep.subr.mxu0 0.0
        %1487 = vmatpush1.msra.mxu0 0.0
        %1488 = vmatprep.subr.mxu0 0.0
        %1489 = vmatpush1.msra.mxu0 0.0
        %1490 = vmatprep.subr.mxu0 0.0
        %1491 = vmatpush1.msra.mxu0 0.0
        %1492 = vmatprep.subr.mxu0 0.0
        %1493 = vmatpush1.msra.mxu0 0.0
        %1494 = vmatprep.mubr.f32.mxu0 0.0
        %1495 = vmatmul.mubr.f32.gmra.mrb[0].mxu0 %v1413
        %v1496 = vpop.f32.mrb[0].mxu0
        %v1497 = vadd.f32 0.0, %v1496
        %v1498 = vpop.f32.mrb[0].mxu0
        %1499 = vdwg.mxu0
        %s1500 = scalar_lea.vmem %s326, 8 [#allocation11]
        %1501 = vst [vmem:[%s1500] sm:$0xff] %v1497
        %s1502 = sand.u32 %s149, 1
        %s1503 = scalar_lea.sflag [#allocation4], %s1502
        %s1504 = sand.u32 %s149, 1
        %s1505 = smul.addr %s1504, 16
        %s1506 = scalar_lea.vmem [#allocation11], %s1505
        // Predicated region
        $region61: #{tpu_custom_call.1} parent=39 // pred_check
          %p1507 = pneg %p159
        $region62: #{tpu_custom_call.1} parent=39 // pred_check_branch
          %1509 = sbr.rel (%p1507) target = $region64
        $region63: #{tpu_custom_call.1} parent=39 // pred_region
          %s1510 = smul.u32 2, %s26
          %s1512 = ssub.s32 256, 256
          %1513 = vsyncadd %s1503, %s1512
          %s1514 = smul.addr %s1510, 128
          %s1515 = scalar_lea.hbm %s5, %s1514
          %s1516 = sshll.u32 %s1506, 4
          %s1517 = int_to_ptr.vmem [resolvable:$true] %s1516
          %1522 = dma.vmem_to_hbm [thread:$0]  %s1517, 256, %s1515, %s1503, 128, 128, 8
        $region64: #{tpu_custom_call.1} parent=39 // pred_fallthru
          _
      $region40: #{tpu_custom_call.1} parent=5 // pred_fallthru
        _
      %p1523 = scmp.le.s32.totalorder 2, %s21
      // Predicated region
      $region65: #{tpu_custom_call.1} parent=5 // pred_check
        %p1524 = pneg %p1523
      $region66: #{tpu_custom_call.1} parent=5 // pred_check_branch
        %1526 = sbr.rel (%p1524) target = $region68
      $region67: #{tpu_custom_call.1} parent=5 // pred_region
        %s1527 = ssub.s32 %s21, 2
        // Predicated region
        $region69: #{tpu_custom_call.1} parent=67 // pred_check
          %p1528 = pneg %p165
        $region70: #{tpu_custom_call.1} parent=67 // pred_check_branch
          %1530 = sbr.rel (%p1528) target = $region72
        $region71: #{tpu_custom_call.1} parent=67 // pred_region
          %s1531 = sand.u32 %s150, 1
          %s1532 = scalar_lea.sflag [#allocation4], %s1531
          %s1533 = sand.u32 %s150, 1
          %s1534 = smul.addr %s1533, 16
          %s1535 = scalar_lea.vmem [#allocation11], %s1534
          %1536 = dma.done %s1532, 256
        $region72: #{tpu_custom_call.1} parent=67 // pred_fallthru
          _
      $region68: #{tpu_custom_call.1} parent=5 // pred_fallthru
        _
    $region6: #{tpu_custom_call.1} parent=1 // loop_footer
      %s25 = sadd.s32 1, %s21
    $region7: #{tpu_custom_call.1} parent=1 // loop_footer_branch
      %20 = sbr.rel target = $region3
    $region8: #{tpu_custom_call.1} parent=1 // loop_exit
      _
    %1537 = vsyncpa [#allocation3], 1
    %s1538 = scalar_lea.sflag [#allocation3], 1
    %1539 = vsyncpa %s1538, 1
    %1540 = vsyncpa [#allocation6], 1
    %s1541 = scalar_lea.sflag [#allocation6], 1
    %1542 = vsyncpa %s1541, 1
    %1543 = vsyncpa [#allocation9], 1
    %1544 = vsyncpa [#allocation4], 1
    %s1545 = scalar_lea.sflag [#allocation4], 1
    %1546 = vsyncpa %s1545, 1

</llo_original>
